<compile_context>
chip_gen: v6e
topology: v6e:2x2x1
jax: 0.10.0
libtpu: 0.0.40
codegen_flags: <defaults>
</compile_context>

<pallas_src>
import numpy as np
import jax
import jax.numpy as jnp
from jax.experimental import pallas as pl
from jax.experimental.pallas import tpu as pltpu


# -----------------------------------------------------------------------------
# Pallas kernel: entire MUNet forward for a (C, TM) tile of pixels.
# Channels ride the sublanes, TM pixels ride the lanes (lane-dense I/O).
# -----------------------------------------------------------------------------
def munet_kernel(x_ref, y_ref,
                 w1_ref, b1_ref, w2_ref, b2_ref, w3_ref, b3_ref,
                 wf1_ref, bf1_ref, wf2_ref, bf2_ref,
                 ws1_ref, bs1_ref, ws2_ref, bs2_ref,
                 wd_ref,
                 abu_ref, out_ref):
    f32 = jnp.float32
    x = x_ref[...].astype(f32)          # (band, TM)
    y = y_ref[...].astype(f32)          # (ldr,  TM)

    def conv(w_ref, h, b_ref=None):
        # 1x1 conv in channel-major layout: (Cout, Cin) @ (Cin, TM).
        out = jnp.dot(w_ref[...].astype(f32), h, preferred_element_type=f32)
        if b_ref is not None:
            out = out + b_ref[...].astype(f32)     # (Cout, 1) broadcast on lanes
        return out

    # ---- fc_hsi: conv+BN+ReLU, conv+BN+ReLU, conv (BN folded into W/b) ----
    h = jnp.maximum(conv(w1_ref, x, b1_ref), 0.0)
    h = jnp.maximum(conv(w2_ref, h, b2_ref), 0.0)
    encode = conv(w3_ref, h, b3_ref)                 # (nc, TM)

    # ---- spectral_fe: conv+BN+ReLU x2 (BN folded) ----
    f = jnp.maximum(conv(wf1_ref, y, bf1_ref), 0.0)
    f = jnp.maximum(conv(wf2_ref, f, bf2_ref), 0.0)  # (nc, TM)

    # ---- spectral_se: conv+ReLU, conv+Sigmoid ----
    s = jnp.maximum(conv(ws1_ref, f, bs1_ref), 0.0)
    att = jax.nn.sigmoid(conv(ws2_ref, s, bs2_ref))  # (nc, TM)

    # ---- abu = softmax over channel (sublane) axis of encode * attention ----
    z = encode * att
    z = z - jnp.max(z, axis=0, keepdims=True)
    e = jnp.exp(z)
    abu = e * pl.reciprocal(jnp.sum(e, axis=0, keepdims=True), approx=True)

    # ---- decoder: conv (no bias) + ReLU ----
    out = jnp.maximum(conv(wd_ref, abu), 0.0)        # (band, TM)

    abu_ref[...] = abu.astype(abu_ref.dtype)
    out_ref[...] = out.astype(out_ref.dtype)


# -----------------------------------------------------------------------------
# Wrapper
# -----------------------------------------------------------------------------
def _round_up(v, m):
    return ((v + m - 1) // m) * m


def munet_forward(x_nchw, y_nchw, params, *, tile_m=8192, out_dtype=None):
    N, band, H, W = x_nchw.shape
    ldr = y_nchw.shape[1]
    nc = params["w3"].shape[0]          # weights stored (Cout, Cin)
    HW = H * W
    in_dtype = x_nchw.dtype
    out_dtype = in_dtype if out_dtype is None else out_dtype

    # Lane-dense pixel tile: multiple of 128, capped so the per-step footprint
    # is safe on v7x's 64 MiB VMEM.  No wrapper-side padding: the ragged final
    # block is handled by Pallas masked edge loads/stores.
    tm = min(_round_up(tile_m, 128), _round_up(HW, 128), 32768)
    # v7x has 2 TensorCores: make sure a single image still yields >= 2
    # parallel grid units so both cores get work (no-op on v5e/v6e).
    if N == 1 and pl.cdiv(HW, tm) < 2 and HW > 128:
        tm = _round_up(pl.cdiv(HW, 2), 128)
    n_tiles = pl.cdiv(HW, tm)

    # NCHW -> (N, C, HW) is a free reshape; inputs stay in their native dtype.
    x3 = x_nchw.reshape(N, band, HW)
    y3 = y_nchw.reshape(N, ldr, HW)

    # Weights/biases stay f32 and VMEM-resident (constant index_map).
    w_order = ["w1", "b1", "w2", "b2", "w3", "b3",
               "wf1", "bf1", "wf2", "bf2",
               "ws1", "bs1", "ws2", "bs2", "wd"]
    w_vals = [params[k].astype(jnp.float32) for k in w_order]
    w_specs = [pl.BlockSpec(params[k].shape, lambda n, i: (0, 0)) for k in w_order]

    def px_spec(c):
        # Batch dim squeezed; kernel sees a (C, TM) slab.
        return pl.BlockSpec((None, c, tm), lambda n, i: (n, 0, i))

    # Explicit VMEM budget from the per-step footprint: double-buffered
    # inputs/outputs + f32 intermediates + weights.  Clamped to [32, 48] MiB:
    # above v5e's 16 MiB scoped default, below v7x's 64 MiB physical.
    in_b = jnp.dtype(in_dtype).itemsize
    out_b = jnp.dtype(out_dtype).itemsize
    per_px = (2 * in_b * (band + ldr)                # double-buffered inputs
              + 2 * out_b * (nc + band)              # double-buffered outputs
              + 4 * (band + band // 2 + band // 4 + 4 * nc + ldr))  # f32 temps
    vmem_limit = int(min(48 << 20, max(32 << 20, 2 * per_px * tm + (2 << 20))))

    abu3, out3 = pl.pallas_call(
        munet_kernel,
        out_shape=(jax.ShapeDtypeStruct((N, nc, HW), out_dtype),
                   jax.ShapeDtypeStruct((N, band, HW), out_dtype)),
        grid_spec=pltpu.PrefetchScalarGridSpec(
            num_scalar_prefetch=0,
            grid=(N, n_tiles),
            in_specs=[px_spec(band), px_spec(ldr)] + w_specs,
            out_specs=[px_spec(nc), px_spec(band)],
        ),
        compiler_params=pltpu.CompilerParams(
            dimension_semantics=("parallel", "parallel"),
            vmem_limit_bytes=vmem_limit),
    )(x3, y3, *w_vals)

    abu = abu3.reshape(N, nc, H, W)
    output = out3.reshape(N, band, H, W)
    return abu, output


# -----------------------------------------------------------------------------
# Parameters: raw PyTorch-style params (+ BN stats) and a general BN fold.
# -----------------------------------------------------------------------------
def make_raw_params(key, band, num_classes, ldr_dim, reduction):
    keys = iter(jax.random.split(key, 40))

    def w(cin, cout, scale=0.1):
        return scale * jax.random.normal(next(keys), (cout, cin), dtype=jnp.float32)

    def b(cout, scale=0.05):
        return scale * jax.random.normal(next(keys), (cout,), dtype=jnp.float32)

    def bn(c):
        # Non-trivial running stats to exercise the general BN fold.
        return {
            "gamma": 1.0 + 0.1 * jax.random.normal(next(keys), (c,), dtype=jnp.float32),
            "beta": 0.05 * jax.random.normal(next(keys), (c,), dtype=jnp.float32),
            "mean": 0.1 * jax.random.normal(next(keys), (c,), dtype=jnp.float32),
            "var": jax.random.uniform(next(keys), (c,), dtype=jnp.float32,
                                      minval=0.5, maxval=1.5),
        }

    b2, b4, ncr = band // 2, band // 4, num_classes // reduction
    p = {}
    p["w1"], p["b1"], p["bn1"] = w(band, b2), b(b2), bn(b2)
    p["w2"], p["b2"], p["bn2"] = w(b2, b4), b(b4), bn(b4)
    p["w3"], p["b3"] = w(b4, num_classes), b(num_classes)
    p["wf1"], p["bf1"], p["bnf1"] = w(ldr_dim, ncr), b(ncr), bn(ncr)
    p["wf2"], p["bf2"], p["bnf2"] = w(ncr, num_classes), b(num_classes), bn(num_classes)
    p["ws1"], p["bs1"] = w(num_classes, ncr), b(ncr)
    p["ws2"], p["bs2"] = w(ncr, num_classes), b(num_classes)
    p["wd"] = w(num_classes, band)
    return p


def fold_bn(w, b, gamma, beta, mean, var, eps=1e-5):
    # Eval-mode BN folded into the preceding conv (general form).
    scale = gamma / jnp.sqrt(var + eps)
    w_f = w * scale[:, None]
    b_f = beta + (b - mean) * scale
    return w_f, b_f[:, None]            # bias as (Cout, 1) for lane broadcast


def fold_params(raw, eps=1e-5):
    def fold(wk, bk, bnk):
        bn = raw[bnk]
        return fold_bn(raw[wk], raw[bk], bn["gamma"], bn["beta"],
                       bn["mean"], bn["var"], eps)

    p = {}
    p["w1"], p["b1"] = fold("w1", "b1", "bn1")
    p["w2"], p["b2"] = fold("w2", "b2", "bn2")
    p["w3"], p["b3"] = raw["w3"], raw["b3"][:, None]
    p["wf1"], p["bf1"] = fold("wf1", "bf1", "bnf1")
    p["wf2"], p["bf2"] = fold("wf2", "bf2", "bnf2")
    p["ws1"], p["bs1"] = raw["ws1"], raw["bs1"][:, None]
    p["ws2"], p["bs2"] = raw["ws2"], raw["bs2"][:, None]
    p["wd"] = raw["wd"]
    return p


# -----------------------------------------------------------------------------
# Pure-JAX reference (un-folded BN, eval mode) for correctness.
# -----------------------------------------------------------------------------
def munet_reference(x_nchw, y_nchw, raw, eps=1e-5):
    N, band, H, W = x_nchw.shape
    ldr = y_nchw.shape[1]
    nc = raw["w3"].shape[0]
    x = x_nchw.reshape(N, band, -1)
    y = y_nchw.reshape(N, ldr, -1)

    def conv(w, h, b=None):
        out = jnp.einsum('oc,nce->noe', w, h)
        if b is not None:
            out = out + b[None, :, None]
        return out

    def bn(h, p):
        scale = p["gamma"] / jnp.sqrt(p["var"] + eps)
        return (h - p["mean"][None, :, None]) * scale[None, :, None] \
            + p["beta"][None, :, None]

    relu = lambda v: jnp.maximum(v, 0.0)
    h = relu(bn(conv(raw["w1"], x, raw["b1"]), raw["bn1"]))
    h = relu(bn(conv(raw["w2"], h, raw["b2"]), raw["bn2"]))
    encode = conv(raw["w3"], h, raw["b3"])
    f = relu(bn(conv(raw["wf1"], y, raw["bf1"]), raw["bnf1"]))
    f = relu(bn(conv(raw["wf2"], f, raw["bf2"]), raw["bnf2"]))
    s = relu(conv(raw["ws1"], f, raw["bs1"]))
    att = jax.nn.sigmoid(conv(raw["ws2"], s, raw["bs2"]))
    abu = jax.nn.softmax(encode * att, axis=1)
    out = relu(conv(raw["wd"], abu))
    return abu.reshape(N, nc, H, W), out.reshape(N, band, H, W)


if __name__ == "__main__":
    # MUNet(band, num_classes, ldr_dim, reduction) at small shapes.
    band, num_classes, ldr_dim, reduction = 16, 8, 4, 2
    N, H, W = 2, 16, 16

    key = jax.random.PRNGKey(0)
    kx, ky, kp, kx2, ky2 = jax.random.split(key, 5)
    x = jax.random.normal(kx, (N, band, H, W), dtype=jnp.float32)
    y = jax.random.normal(ky, (N, ldr_dim, H, W), dtype=jnp.float32)
    raw = make_raw_params(kp, band, num_classes, ldr_dim, reduction)
    params = fold_params(raw)

    abu_ref, out_ref = munet_reference(x, y, raw)

    # f32 I/O path (inputs consumed in native f32, outputs f32).
    abu, output = munet_forward(x, y, params, tile_m=8192)
    jax.block_until_ready((abu, output))
    np.testing.assert_allclose(np.asarray(abu), np.asarray(abu_ref),
                               rtol=1e-3, atol=1e-3)
    np.testing.assert_allclose(np.asarray(output), np.asarray(out_ref),
                               rtol=1e-3, atol=1e-3)

    # bf16-output path: inputs/weights/math stay f32, only writeback is bf16.
    abu16, out16 = munet_forward(x, y, params, tile_m=8192,
                                 out_dtype=jnp.bfloat16)
    jax.block_until_ready((abu16, out16))
    np.testing.assert_allclose(np.asarray(abu16.astype(jnp.float32)),
                               np.asarray(abu_ref), rtol=2e-2, atol=2e-2)
    np.testing.assert_allclose(np.asarray(out16.astype(jnp.float32)),
                               np.asarray(out_ref), rtol=2e-2, atol=2e-2)

    # Ragged spatial size + single image: exercises masked edge blocks and the
    # N==1 tile split (>= 2 parallel grid units for v7x's two TensorCores).
    H2 = W2 = 20   # HW = 400 -> split into 2 tiles of 256, 2nd tile ragged
    x2 = jax.random.normal(kx2, (1, band, H2, W2), dtype=jnp.float32)
    y2 = jax.random.normal(ky2, (1, ldr_dim, H2, W2), dtype=jnp.float32)
    abu2_ref, out2_ref = munet_reference(x2, y2, raw)
    abu2, out2 = munet_forward(x2, y2, params, tile_m=8192)
    jax.block_until_ready((abu2, out2))
    np.testing.assert_allclose(np.asarray(abu2), np.asarray(abu2_ref),
                               rtol=1e-3, atol=1e-3)
    np.testing.assert_allclose(np.asarray(out2), np.asarray(out2_ref),
                               rtol=1e-3, atol=1e-3)

    print("KERNEL_OK")
</pallas_src>

<mosaic_0001>
module attributes {stable_mosaic.version = 11 : i64} {
  func.func @munet_kernel(%arg0: i32, %arg1: i32, %arg2: memref<1x16x256xf32, #tpu.memory_space<vmem>>, %arg3: memref<1x4x256xf32, #tpu.memory_space<vmem>>, %arg4: memref<8x16xf32, #tpu.memory_space<vmem>>, %arg5: memref<8x1xf32, #tpu.memory_space<vmem>>, %arg6: memref<4x8xf32, #tpu.memory_space<vmem>>, %arg7: memref<4x1xf32, #tpu.memory_space<vmem>>, %arg8: memref<8x4xf32, #tpu.memory_space<vmem>>, %arg9: memref<8x1xf32, #tpu.memory_space<vmem>>, %arg10: memref<4x4xf32, #tpu.memory_space<vmem>>, %arg11: memref<4x1xf32, #tpu.memory_space<vmem>>, %arg12: memref<8x4xf32, #tpu.memory_space<vmem>>, %arg13: memref<8x1xf32, #tpu.memory_space<vmem>>, %arg14: memref<4x8xf32, #tpu.memory_space<vmem>>, %arg15: memref<4x1xf32, #tpu.memory_space<vmem>>, %arg16: memref<8x4xf32, #tpu.memory_space<vmem>>, %arg17: memref<8x1xf32, #tpu.memory_space<vmem>>, %arg18: memref<16x8xf32, #tpu.memory_space<vmem>>, %arg19: memref<1x8x256xf32, #tpu.memory_space<vmem>>, %arg20: memref<1x16x256xf32, #tpu.memory_space<vmem>>) attributes {dimension_semantics = [#tpu.dimension_semantics<parallel>, #tpu.dimension_semantics<parallel>], iteration_bounds = array<i64: 2, 1>, scalar_prefetch = 0 : i64, scratch_operands = 0 : i64, tpu.core_type = #tpu.core_type<tc>, window_params = [{transform_indices = @transform_0, window_bounds = array<i64: 1, 16, 256>}, {transform_indices = @transform_1, window_bounds = array<i64: 1, 4, 256>}, {pipeline_mode = #tpu.pipeline_mode<synchronous>, transform_indices = @transform_2, window_bounds = array<i64: 8, 16>}, {pipeline_mode = #tpu.pipeline_mode<synchronous>, transform_indices = @transform_3, window_bounds = array<i64: 8, 1>}, {pipeline_mode = #tpu.pipeline_mode<synchronous>, transform_indices = @transform_4, window_bounds = array<i64: 4, 8>}, {pipeline_mode = #tpu.pipeline_mode<synchronous>, transform_indices = @transform_5, window_bounds = array<i64: 4, 1>}, {pipeline_mode = #tpu.pipeline_mode<synchronous>, transform_indices = @transform_6, window_bounds = array<i64: 8, 4>}, {pipeline_mode = #tpu.pipeline_mode<synchronous>, transform_indices = @transform_7, window_bounds = array<i64: 8, 1>}, {pipeline_mode = #tpu.pipeline_mode<synchronous>, transform_indices = @transform_8, window_bounds = array<i64: 4, 4>}, {pipeline_mode = #tpu.pipeline_mode<synchronous>, transform_indices = @transform_9, window_bounds = array<i64: 4, 1>}, {pipeline_mode = #tpu.pipeline_mode<synchronous>, transform_indices = @transform_10, window_bounds = array<i64: 8, 4>}, {pipeline_mode = #tpu.pipeline_mode<synchronous>, transform_indices = @transform_11, window_bounds = array<i64: 8, 1>}, {pipeline_mode = #tpu.pipeline_mode<synchronous>, transform_indices = @transform_12, window_bounds = array<i64: 4, 8>}, {pipeline_mode = #tpu.pipeline_mode<synchronous>, transform_indices = @transform_13, window_bounds = array<i64: 4, 1>}, {pipeline_mode = #tpu.pipeline_mode<synchronous>, transform_indices = @transform_14, window_bounds = array<i64: 8, 4>}, {pipeline_mode = #tpu.pipeline_mode<synchronous>, transform_indices = @transform_15, window_bounds = array<i64: 8, 1>}, {pipeline_mode = #tpu.pipeline_mode<synchronous>, transform_indices = @transform_16, window_bounds = array<i64: 16, 8>}, {transform_indices = @transform_17, window_bounds = array<i64: 1, 8, 256>}, {transform_indices = @transform_18, window_bounds = array<i64: 1, 16, 256>}]} {
    %c0 = arith.constant 0 : index
    %c0_0 = arith.constant 0 : index
    %c0_1 = arith.constant 0 : index
    %0 = vector.load %arg2[%c0, %c0_0, %c0_1] : memref<1x16x256xf32, #tpu.memory_space<vmem>>, vector<1x16x256xf32>
    %1 = vector.shape_cast %0 : vector<1x16x256xf32> to vector<16x256xf32>
    %c0_2 = arith.constant 0 : index
    %c0_3 = arith.constant 0 : index
    %c0_4 = arith.constant 0 : index
    %2 = vector.load %arg3[%c0_2, %c0_3, %c0_4] : memref<1x4x256xf32, #tpu.memory_space<vmem>>, vector<1x4x256xf32>
    %3 = vector.shape_cast %2 : vector<1x4x256xf32> to vector<4x256xf32>
    %c0_5 = arith.constant 0 : index
    %c0_6 = arith.constant 0 : index
    %4 = vector.load %arg4[%c0_5, %c0_6] : memref<8x16xf32, #tpu.memory_space<vmem>>, vector<8x16xf32>
    %cst = arith.constant dense<0.000000e+00> : vector<8x256xf32>
    %5 = tpu.matmul %4, %1, %cst {dimension_numbers = #tpu.dot_dimension_numbers<[1], [0], [0], [1], [0, 0, 1, 1], [], []>} : vector<8x16xf32>, vector<16x256xf32>, vector<8x256xf32> -> vector<8x256xf32>
    %c0_7 = arith.constant 0 : index
    %c0_8 = arith.constant 0 : index
    %6 = vector.load %arg5[%c0_7, %c0_8] : memref<8x1xf32, #tpu.memory_space<vmem>>, vector<8x1xf32>
    %7 = vector.broadcast %6 : vector<8x1xf32> to vector<8x256xf32>
    %8 = arith.addf %5, %7 : vector<8x256xf32>
    %cst_9 = arith.constant 0.000000e+00 : f32
    %9 = vector.broadcast %cst_9 : f32 to vector<8x256xf32>
    %10 = arith.maximumf %8, %9 : vector<8x256xf32>
    %c0_10 = arith.constant 0 : index
    %c0_11 = arith.constant 0 : index
    %11 = vector.load %arg6[%c0_10, %c0_11] : memref<4x8xf32, #tpu.memory_space<vmem>>, vector<4x8xf32>
    %cst_12 = arith.constant dense<0.000000e+00> : vector<4x256xf32>
    %12 = tpu.matmul %11, %10, %cst_12 {dimension_numbers = #tpu.dot_dimension_numbers<[1], [0], [0], [1], [0, 0, 1, 1], [], []>} : vector<4x8xf32>, vector<8x256xf32>, vector<4x256xf32> -> vector<4x256xf32>
    %c0_13 = arith.constant 0 : index
    %c0_14 = arith.constant 0 : index
    %13 = vector.load %arg7[%c0_13, %c0_14] : memref<4x1xf32, #tpu.memory_space<vmem>>, vector<4x1xf32>
    %14 = vector.broadcast %13 : vector<4x1xf32> to vector<4x256xf32>
    %15 = arith.addf %12, %14 : vector<4x256xf32>
    %cst_15 = arith.constant 0.000000e+00 : f32
    %16 = vector.broadcast %cst_15 : f32 to vector<4x256xf32>
    %17 = arith.maximumf %15, %16 : vector<4x256xf32>
    %c0_16 = arith.constant 0 : index
    %c0_17 = arith.constant 0 : index
    %18 = vector.load %arg8[%c0_16, %c0_17] : memref<8x4xf32, #tpu.memory_space<vmem>>, vector<8x4xf32>
    %cst_18 = arith.constant dense<0.000000e+00> : vector<8x256xf32>
    %19 = tpu.matmul %18, %17, %cst_18 {dimension_numbers = #tpu.dot_dimension_numbers<[1], [0], [0], [1], [0, 0, 1, 1], [], []>} : vector<8x4xf32>, vector<4x256xf32>, vector<8x256xf32> -> vector<8x256xf32>
    %c0_19 = arith.constant 0 : index
    %c0_20 = arith.constant 0 : index
    %20 = vector.load %arg9[%c0_19, %c0_20] : memref<8x1xf32, #tpu.memory_space<vmem>>, vector<8x1xf32>
    %21 = vector.broadcast %20 : vector<8x1xf32> to vector<8x256xf32>
    %22 = arith.addf %19, %21 : vector<8x256xf32>
    %c0_21 = arith.constant 0 : index
    %c0_22 = arith.constant 0 : index
    %23 = vector.load %arg10[%c0_21, %c0_22] : memref<4x4xf32, #tpu.memory_space<vmem>>, vector<4x4xf32>
    %cst_23 = arith.constant dense<0.000000e+00> : vector<4x256xf32>
    %24 = tpu.matmul %23, %3, %cst_23 {dimension_numbers = #tpu.dot_dimension_numbers<[1], [0], [0], [1], [0, 0, 1, 1], [], []>} : vector<4x4xf32>, vector<4x256xf32>, vector<4x256xf32> -> vector<4x256xf32>
    %c0_24 = arith.constant 0 : index
    %c0_25 = arith.constant 0 : index
    %25 = vector.load %arg11[%c0_24, %c0_25] : memref<4x1xf32, #tpu.memory_space<vmem>>, vector<4x1xf32>
    %26 = vector.broadcast %25 : vector<4x1xf32> to vector<4x256xf32>
    %27 = arith.addf %24, %26 : vector<4x256xf32>
    %cst_26 = arith.constant 0.000000e+00 : f32
    %28 = vector.broadcast %cst_26 : f32 to vector<4x256xf32>
    %29 = arith.maximumf %27, %28 : vector<4x256xf32>
    %c0_27 = arith.constant 0 : index
    %c0_28 = arith.constant 0 : index
    %30 = vector.load %arg12[%c0_27, %c0_28] : memref<8x4xf32, #tpu.memory_space<vmem>>, vector<8x4xf32>
    %cst_29 = arith.constant dense<0.000000e+00> : vector<8x256xf32>
    %31 = tpu.matmul %30, %29, %cst_29 {dimension_numbers = #tpu.dot_dimension_numbers<[1], [0], [0], [1], [0, 0, 1, 1], [], []>} : vector<8x4xf32>, vector<4x256xf32>, vector<8x256xf32> -> vector<8x256xf32>
    %c0_30 = arith.constant 0 : index
    %c0_31 = arith.constant 0 : index
    %32 = vector.load %arg13[%c0_30, %c0_31] : memref<8x1xf32, #tpu.memory_space<vmem>>, vector<8x1xf32>
    %33 = vector.broadcast %32 : vector<8x1xf32> to vector<8x256xf32>
    %34 = arith.addf %31, %33 : vector<8x256xf32>
    %cst_32 = arith.constant 0.000000e+00 : f32
    %35 = vector.broadcast %cst_32 : f32 to vector<8x256xf32>
    %36 = arith.maximumf %34, %35 : vector<8x256xf32>
    %c0_33 = arith.constant 0 : index
    %c0_34 = arith.constant 0 : index
    %37 = vector.load %arg14[%c0_33, %c0_34] : memref<4x8xf32, #tpu.memory_space<vmem>>, vector<4x8xf32>
    %cst_35 = arith.constant dense<0.000000e+00> : vector<4x256xf32>
    %38 = tpu.matmul %37, %36, %cst_35 {dimension_numbers = #tpu.dot_dimension_numbers<[1], [0], [0], [1], [0, 0, 1, 1], [], []>} : vector<4x8xf32>, vector<8x256xf32>, vector<4x256xf32> -> vector<4x256xf32>
    %c0_36 = arith.constant 0 : index
    %c0_37 = arith.constant 0 : index
    %39 = vector.load %arg15[%c0_36, %c0_37] : memref<4x1xf32, #tpu.memory_space<vmem>>, vector<4x1xf32>
    %40 = vector.broadcast %39 : vector<4x1xf32> to vector<4x256xf32>
    %41 = arith.addf %38, %40 : vector<4x256xf32>
    %cst_38 = arith.constant 0.000000e+00 : f32
    %42 = vector.broadcast %cst_38 : f32 to vector<4x256xf32>
    %43 = arith.maximumf %41, %42 : vector<4x256xf32>
    %c0_39 = arith.constant 0 : index
    %c0_40 = arith.constant 0 : index
    %44 = vector.load %arg16[%c0_39, %c0_40] : memref<8x4xf32, #tpu.memory_space<vmem>>, vector<8x4xf32>
    %cst_41 = arith.constant dense<0.000000e+00> : vector<8x256xf32>
    %45 = tpu.matmul %44, %43, %cst_41 {dimension_numbers = #tpu.dot_dimension_numbers<[1], [0], [0], [1], [0, 0, 1, 1], [], []>} : vector<8x4xf32>, vector<4x256xf32>, vector<8x256xf32> -> vector<8x256xf32>
    %c0_42 = arith.constant 0 : index
    %c0_43 = arith.constant 0 : index
    %46 = vector.load %arg17[%c0_42, %c0_43] : memref<8x1xf32, #tpu.memory_space<vmem>>, vector<8x1xf32>
    %47 = vector.broadcast %46 : vector<8x1xf32> to vector<8x256xf32>
    %48 = arith.addf %45, %47 : vector<8x256xf32>
    %49 = arith.negf %48 : vector<8x256xf32>
    %50 = math.exp %49 : vector<8x256xf32>
    %cst_44 = arith.constant 1.000000e+00 : f32
    %51 = vector.broadcast %cst_44 : f32 to vector<8x256xf32>
    %52 = arith.addf %51, %50 : vector<8x256xf32>
    %53 = arith.divf %51, %52 : vector<8x256xf32>
    %54 = arith.mulf %22, %53 : vector<8x256xf32>
    %cst_45 = arith.constant dense<0xFF800000> : vector<256xf32>
    %55 = vector.multi_reduction <maximumf>, %54, %cst_45 [0] : vector<8x256xf32> to vector<256xf32>
    %56 = vector.shape_cast %55 : vector<256xf32> to vector<1x256xf32>
    %57 = vector.broadcast %56 : vector<1x256xf32> to vector<8x256xf32>
    %58 = arith.subf %54, %57 : vector<8x256xf32>
    %59 = math.exp %58 : vector<8x256xf32>
    %cst_46 = arith.constant dense<0.000000e+00> : vector<256xf32>
    %60 = vector.multi_reduction <add>, %59, %cst_46 [0] : vector<8x256xf32> to vector<256xf32>
    %61 = vector.shape_cast %60 : vector<256xf32> to vector<1x256xf32>
    %62 = tpu.reciprocal %61 {approx = true} : vector<1x256xf32> -> vector<1x256xf32>
    %63 = vector.broadcast %62 : vector<1x256xf32> to vector<8x256xf32>
    %64 = arith.mulf %59, %63 : vector<8x256xf32>
    %c0_47 = arith.constant 0 : index
    %c0_48 = arith.constant 0 : index
    %65 = vector.load %arg18[%c0_47, %c0_48] : memref<16x8xf32, #tpu.memory_space<vmem>>, vector<16x8xf32>
    %cst_49 = arith.constant dense<0.000000e+00> : vector<16x256xf32>
    %66 = tpu.matmul %65, %64, %cst_49 {dimension_numbers = #tpu.dot_dimension_numbers<[1], [0], [0], [1], [0, 0, 1, 1], [], []>} : vector<16x8xf32>, vector<8x256xf32>, vector<16x256xf32> -> vector<16x256xf32>
    %cst_50 = arith.constant 0.000000e+00 : f32
    %67 = vector.broadcast %cst_50 : f32 to vector<16x256xf32>
    %68 = arith.maximumf %66, %67 : vector<16x256xf32>
    %c0_51 = arith.constant 0 : index
    %c0_52 = arith.constant 0 : index
    %c0_53 = arith.constant 0 : index
    %69 = vector.load %arg19[%c0_51, %c0_52, %c0_53] : memref<1x8x256xf32, #tpu.memory_space<vmem>>, vector<1x8x256xf32>
    %70 = vector.shape_cast %69 : vector<1x8x256xf32> to vector<8x256xf32>
    %71 = vector.shape_cast %64 : vector<8x256xf32> to vector<1x8x256xf32>
    tpu.vector_store %arg19[%c0_51, %c0_52, %c0_53], %71 {strides = array<i32>} : memref<1x8x256xf32, #tpu.memory_space<vmem>>, vector<1x8x256xf32>,
    %c0_54 = arith.constant 0 : index
    %c0_55 = arith.constant 0 : index
    %c0_56 = arith.constant 0 : index
    %72 = vector.load %arg20[%c0_54, %c0_55, %c0_56] : memref<1x16x256xf32, #tpu.memory_space<vmem>>, vector<1x16x256xf32>
    %73 = vector.shape_cast %72 : vector<1x16x256xf32> to vector<16x256xf32>
    %74 = vector.shape_cast %68 : vector<16x256xf32> to vector<1x16x256xf32>
    tpu.vector_store %arg20[%c0_54, %c0_55, %c0_56], %74 {strides = array<i32>} : memref<1x16x256xf32, #tpu.memory_space<vmem>>, vector<1x16x256xf32>,
    return
  }
  func.func @transform_0(%arg0: i32, %arg1: i32) -> (i32, i32, i32) {
    %c0_i32 = arith.constant 0 : i32
    %c0_i32_0 = arith.constant 0 : i32
    return %arg0, %c0_i32, %arg1 : i32, i32, i32
  }
  func.func @transform_1(%arg0: i32, %arg1: i32) -> (i32, i32, i32) {
    %c0_i32 = arith.constant 0 : i32
    %c0_i32_0 = arith.constant 0 : i32
    return %arg0, %c0_i32, %arg1 : i32, i32, i32
  }
  func.func @transform_2(%arg0: i32, %arg1: i32) -> (i32, i32) {
    %c0_i32 = arith.constant 0 : i32
    %c0_i32_0 = arith.constant 0 : i32
    %c0_i32_1 = arith.constant 0 : i32
    return %c0_i32, %c0_i32_0 : i32, i32
  }
  func.func @transform_3(%arg0: i32, %arg1: i32) -> (i32, i32) {
    %c0_i32 = arith.constant 0 : i32
    %c0_i32_0 = arith.constant 0 : i32
    %c0_i32_1 = arith.constant 0 : i32
    return %c0_i32, %c0_i32_0 : i32, i32
  }
  func.func @transform_4(%arg0: i32, %arg1: i32) -> (i32, i32) {
    %c0_i32 = arith.constant 0 : i32
    %c0_i32_0 = arith.constant 0 : i32
    %c0_i32_1 = arith.constant 0 : i32
    return %c0_i32, %c0_i32_0 : i32, i32
  }
  func.func @transform_5(%arg0: i32, %arg1: i32) -> (i32, i32) {
    %c0_i32 = arith.constant 0 : i32
    %c0_i32_0 = arith.constant 0 : i32
    %c0_i32_1 = arith.constant 0 : i32
    return %c0_i32, %c0_i32_0 : i32, i32
  }
  func.func @transform_6(%arg0: i32, %arg1: i32) -> (i32, i32) {
    %c0_i32 = arith.constant 0 : i32
    %c0_i32_0 = arith.constant 0 : i32
    %c0_i32_1 = arith.constant 0 : i32
    return %c0_i32, %c0_i32_0 : i32, i32
  }
  func.func @transform_7(%arg0: i32, %arg1: i32) -> (i32, i32) {
    %c0_i32 = arith.constant 0 : i32
    %c0_i32_0 = arith.constant 0 : i32
    %c0_i32_1 = arith.constant 0 : i32
    return %c0_i32, %c0_i32_0 : i32, i32
  }
  func.func @transform_8(%arg0: i32, %arg1: i32) -> (i32, i32) {
    %c0_i32 = arith.constant 0 : i32
    %c0_i32_0 = arith.constant 0 : i32
    %c0_i32_1 = arith.constant 0 : i32
    return %c0_i32, %c0_i32_0 : i32, i32
  }
  func.func @transform_9(%arg0: i32, %arg1: i32) -> (i32, i32) {
    %c0_i32 = arith.constant 0 : i32
    %c0_i32_0 = arith.constant 0 : i32
    %c0_i32_1 = arith.constant 0 : i32
    return %c0_i32, %c0_i32_0 : i32, i32
  }
  func.func @transform_10(%arg0: i32, %arg1: i32) -> (i32, i32) {
    %c0_i32 = arith.constant 0 : i32
    %c0_i32_0 = arith.constant 0 : i32
    %c0_i32_1 = arith.constant 0 : i32
    return %c0_i32, %c0_i32_0 : i32, i32
  }
  func.func @transform_11(%arg0: i32, %arg1: i32) -> (i32, i32) {
    %c0_i32 = arith.constant 0 : i32
    %c0_i32_0 = arith.constant 0 : i32
    %c0_i32_1 = arith.constant 0 : i32
    return %c0_i32, %c0_i32_0 : i32, i32
  }
  func.func @transform_12(%arg0: i32, %arg1: i32) -> (i32, i32) {
    %c0_i32 = arith.constant 0 : i32
    %c0_i32_0 = arith.constant 0 : i32
    %c0_i32_1 = arith.constant 0 : i32
    return %c0_i32, %c0_i32_0 : i32, i32
  }
  func.func @transform_13(%arg0: i32, %arg1: i32) -> (i32, i32) {
    %c0_i32 = arith.constant 0 : i32
    %c0_i32_0 = arith.constant 0 : i32
    %c0_i32_1 = arith.constant 0 : i32
    return %c0_i32, %c0_i32_0 : i32, i32
  }
  func.func @transform_14(%arg0: i32, %arg1: i32) -> (i32, i32) {
    %c0_i32 = arith.constant 0 : i32
    %c0_i32_0 = arith.constant 0 : i32
    %c0_i32_1 = arith.constant 0 : i32
    return %c0_i32, %c0_i32_0 : i32, i32
  }
  func.func @transform_15(%arg0: i32, %arg1: i32) -> (i32, i32) {
    %c0_i32 = arith.constant 0 : i32
    %c0_i32_0 = arith.constant 0 : i32
    %c0_i32_1 = arith.constant 0 : i32
    return %c0_i32, %c0_i32_0 : i32, i32
  }
  func.func @transform_16(%arg0: i32, %arg1: i32) -> (i32, i32) {
    %c0_i32 = arith.constant 0 : i32
    %c0_i32_0 = arith.constant 0 : i32
    %c0_i32_1 = arith.constant 0 : i32
    return %c0_i32, %c0_i32_0 : i32, i32
  }
  func.func @transform_17(%arg0: i32, %arg1: i32) -> (i32, i32, i32) {
    %c0_i32 = arith.constant 0 : i32
    %c0_i32_0 = arith.constant 0 : i32
    return %arg0, %c0_i32, %arg1 : i32, i32, i32
  }
  func.func @transform_18(%arg0: i32, %arg1: i32) -> (i32, i32, i32) {
    %c0_i32 = arith.constant 0 : i32
    %c0_i32_0 = arith.constant 0 : i32
    return %arg0, %c0_i32, %arg1 : i32, i32, i32
  }
}

</mosaic_0001>

<llo_original>
// kernel: tpu_custom_call.1
$region0: #{tpu_custom_call.1}
  #allocation0 [shape = 'u32[]', space=smem, size = 0x4, offset = 0x4, fixed_abs, tag = 'smem constant byte address 0x4 - core index']
  #allocation1 [shape = 'u32[144,128]{1,0:T(1,128)}', space=vmem, size = 0x12000, scoped, tag = 'internal scratch']
  %s0 = inlined_call_operand.vmem [shape: f32[2,16,256], index: 0, kind: input, shape index: {}]
  %s1 = inlined_call_operand.vmem [shape: f32[2,4,256], index: 1, kind: input, shape index: {}]
  %s2 = inlined_call_operand.vmem [shape: f32[8,16], index: 2, kind: input, shape index: {}]
  %s3 = inlined_call_operand.vmem [shape: f32[8,1], index: 3, kind: input, shape index: {}]
  %s4 = inlined_call_operand.vmem [shape: f32[4,8], index: 4, kind: input, shape index: {}]
  %s5 = inlined_call_operand.vmem [shape: f32[4,1], index: 5, kind: input, shape index: {}]
  %s6 = inlined_call_operand.vmem [shape: f32[8,4], index: 6, kind: input, shape index: {}]
  %s7 = inlined_call_operand.vmem [shape: f32[8,1], index: 7, kind: input, shape index: {}]
  %s8 = inlined_call_operand.vmem [shape: f32[4,4], index: 8, kind: input, shape index: {}]
  %s9 = inlined_call_operand.vmem [shape: f32[4,1], index: 9, kind: input, shape index: {}]
  %s10 = inlined_call_operand.vmem [shape: f32[8,4], index: 10, kind: input, shape index: {}]
  %s11 = inlined_call_operand.vmem [shape: f32[8,1], index: 11, kind: input, shape index: {}]
  %s12 = inlined_call_operand.vmem [shape: f32[4,8], index: 12, kind: input, shape index: {}]
  %s13 = inlined_call_operand.vmem [shape: f32[4,1], index: 13, kind: input, shape index: {}]
  %s14 = inlined_call_operand.vmem [shape: f32[8,4], index: 14, kind: input, shape index: {}]
  %s15 = inlined_call_operand.vmem [shape: f32[8,1], index: 15, kind: input, shape index: {}]
  %s16 = inlined_call_operand.vmem [shape: f32[16,8], index: 16, kind: input, shape index: {}]
  %s17 = inlined_call_operand.hbm [shape: f32[2,8,256], index: 17, kind: output, shape index: {0}]
  %s18 = inlined_call_operand.hbm [shape: f32[2,16,256], index: 18, kind: output, shape index: {1}]
  %19 = xla_tuple %s17, %s18
  %s20 = sld [smem:[#allocation0]]
  $region109: #{tpu_custom_call.1} parent=0
    _
  %s22 = ssub.s32 1, %s20
  %s23 = scalar_select 0, %s22, %s20
  $region1: #{tpu_custom_call.1} parent=0
    #allocation2 [shape = 'u8[16384]{0}', space=vmem, size = 0x4000, scoped, tag = 'output window, operand 0']
    #allocation3 [shape = 's32[2]{0}', space=sflag, size = 0x8, scoped, tag = 'scoped memory for tpu_custom_call.1']
    #allocation4 [shape = 'u8[32768]{0}', space=vmem, size = 0x8000, scoped, tag = 'output window, operand 1']
    #allocation5 [shape = 's32[2]{0}', space=sflag, size = 0x8, scoped, tag = 'scoped memory for tpu_custom_call.1']
    %24 = vsyncpa [#allocation3], 0
    %s25 = scalar_lea.sflag [#allocation3], 1
    %26 = vsyncpa %s25, 0
    %27 = vsyncpa [#allocation5], 0
    %s28 = scalar_lea.sflag [#allocation5], 1
    %29 = vsyncpa %s28, 0
    loop: start=0, step=1, limit=4
    $region2: #{tpu_custom_call.1} parent=1 // loop_pre_header
      _
    $region3: #{tpu_custom_call.1} parent=1 // loop_header
      %s31 = sphi 0, %s35
      %p32 = scmp.ge.s32.totalorder %s31, 4
      %s38 = sphi 0, %s50
      %s39 = sphi 0, %s46
      %s40 = sphi 0, %s38
      %s41 = sphi 0, %s39
      %s42 = sphi 0, %s40
      %s43 = sphi 0, %s41
      %s55 = sphi 0, %s57
      %s58 = sphi 0, %s55
      %s59 = sphi 0, %s58
      %s75 = sphi 0, %s59
      %s83 = sphi 0, %s85
      %s86 = sphi 0, %s83
      %s87 = sphi 0, %s86
      %s103 = sphi 0, %s87
      %s107 = sphi 0, %s107
      %s109 = sphi 0, %s107
      %s110 = sphi 0, %s109
      %s124 = sphi 0, %s110
      %s128 = sphi 0, %s128
      %s130 = sphi 0, %s128
      %s131 = sphi 0, %s130
      %s145 = sphi 0, %s131
      %s149 = sphi 0, %s149
      %s151 = sphi 0, %s149
      %s152 = sphi 0, %s151
      %s166 = sphi 0, %s152
      %s170 = sphi 0, %s170
      %s172 = sphi 0, %s170
      %s173 = sphi 0, %s172
      %s187 = sphi 0, %s173
      %s191 = sphi 0, %s191
      %s193 = sphi 0, %s191
      %s194 = sphi 0, %s193
      %s208 = sphi 0, %s194
      %s212 = sphi 0, %s212
      %s214 = sphi 0, %s212
      %s215 = sphi 0, %s214
      %s229 = sphi 0, %s215
      %s233 = sphi 0, %s233
      %s235 = sphi 0, %s233
      %s236 = sphi 0, %s235
      %s250 = sphi 0, %s236
      %s254 = sphi 0, %s254
      %s256 = sphi 0, %s254
      %s257 = sphi 0, %s256
      %s271 = sphi 0, %s257
      %s275 = sphi 0, %s275
      %s277 = sphi 0, %s275
      %s278 = sphi 0, %s277
      %s292 = sphi 0, %s278
      %s296 = sphi 0, %s296
      %s298 = sphi 0, %s296
      %s299 = sphi 0, %s298
      %s313 = sphi 0, %s299
      %s317 = sphi 0, %s317
      %s319 = sphi 0, %s317
      %s320 = sphi 0, %s319
      %s334 = sphi 0, %s320
      %s338 = sphi 0, %s338
      %s340 = sphi 0, %s338
      %s341 = sphi 0, %s340
      %s355 = sphi 0, %s341
      %s359 = sphi 0, %s359
      %s361 = sphi 0, %s359
      %s362 = sphi 0, %s361
      %s376 = sphi 0, %s362
      %s380 = sphi 0, %s380
      %s382 = sphi 0, %s380
      %s383 = sphi 0, %s382
      %s397 = sphi 0, %s383
      %s401 = sphi 0, %s401
      %s403 = sphi 0, %s401
      %s404 = sphi 0, %s403
      %s418 = sphi 0, %s404
      %s426 = sphi 0, %s428
      %s429 = sphi 0, %s426
      %s430 = sphi 0, %s429
      %s446 = sphi 0, %s430
      %s454 = sphi 0, %s456
      %s457 = sphi 0, %s454
      %s458 = sphi 0, %s457
      %s474 = sphi 0, %s458
    $region4: #{tpu_custom_call.1} parent=1 // loop_header_branch
      %34 = sbr.rel (%p32) target = $region8
    $region5: #{tpu_custom_call.1} parent=1 // loop_body
      %s36 = ssub.s32 %s31, 1
      %s37 = ssub.s32 %s31, 2
      %s44 = sadd.s32 1, %s39
      %p45 = scmp.ge.s32.totalorder %s44, 1
      %s46 = scalar_select %p45, 0, %s44
      %s47 = sadd.s32 1, %s38
      %s48 = scalar_select %p45, %s47, %s38
      %p49 = scmp.ge.s32.totalorder %s48, 2
      %s50 = scalar_select %p49, 0, %s48
      %s51 = ssub.s32 %s38, %s50
      %s52 = ssub.s32 %s39, %s46
      %s53 = sor.u32 %s51, %s52
      %p54 = scmp.eq.s32.totalorder %s53, 0
      %s56 = sadd.s32 %s55, 1
      %s57 = scalar_select %p54, %s55, %s56
      %p60 = pneg %p54
      %p61 = scmp.eq.s32.totalorder %s31, 1
      %p62 = por %p60, %p61
      %p63 = scmp.ne.s32.totalorder %s55, %s58
      %p64 = scmp.eq.s32.totalorder %s31, 0
      %p65 = por %p63, %p64
      %p66 = scmp.ne.s32.totalorder %s55, %s58
      %p67 = scmp.eq.s32.totalorder %s36, 1
      %p68 = por %p66, %p67
      %p69 = scmp.ne.s32.totalorder %s58, %s59
      %p70 = scmp.eq.s32.totalorder %s36, 0
      %p71 = por %p69, %p70
      %p72 = scmp.ne.s32.totalorder %s58, %s59
      %p73 = scmp.eq.s32.totalorder %s37, 1
      %p74 = por %p72, %p73
      %p76 = scmp.ne.s32.totalorder %s59, %s75
      %p77 = scmp.eq.s32.totalorder %s37, 0
      %p78 = por %p76, %p77
      %s79 = ssub.s32 %s38, %s50
      %s80 = ssub.s32 %s39, %s46
      %s81 = sor.u32 %s79, %s80
      %p82 = scmp.eq.s32.totalorder %s81, 0
      %s84 = sadd.s32 %s83, 1
      %s85 = scalar_select %p82, %s83, %s84
      %p88 = pneg %p82
      %p89 = scmp.eq.s32.totalorder %s31, 1
      %p90 = por %p88, %p89
      %p91 = scmp.ne.s32.totalorder %s83, %s86
      %p92 = scmp.eq.s32.totalorder %s31, 0
      %p93 = por %p91, %p92
      %p94 = scmp.ne.s32.totalorder %s83, %s86
      %p95 = scmp.eq.s32.totalorder %s36, 1
      %p96 = por %p94, %p95
      %p97 = scmp.ne.s32.totalorder %s86, %s87
      %p98 = scmp.eq.s32.totalorder %s36, 0
      %p99 = por %p97, %p98
      %p100 = scmp.ne.s32.totalorder %s86, %s87
      %p101 = scmp.eq.s32.totalorder %s37, 1
      %p102 = por %p100, %p101
      %p104 = scmp.ne.s32.totalorder %s87, %s103
      %p105 = scmp.eq.s32.totalorder %s37, 0
      %p106 = por %p104, %p105
      %s108 = sadd.s32 %s107, 1
      %p111 = scmp.eq.s32.totalorder %s31, 1
      %p112 = scmp.ne.s32.totalorder %s107, %s109
      %p113 = scmp.eq.s32.totalorder %s31, 0
      %p114 = por %p112, %p113
      %p115 = scmp.ne.s32.totalorder %s107, %s109
      %p116 = scmp.eq.s32.totalorder %s36, 1
      %p117 = por %p115, %p116
      %p118 = scmp.ne.s32.totalorder %s109, %s110
      %p119 = scmp.eq.s32.totalorder %s36, 0
      %p120 = por %p118, %p119
      %p121 = scmp.ne.s32.totalorder %s109, %s110
      %p122 = scmp.eq.s32.totalorder %s37, 1
      %p123 = por %p121, %p122
      %p125 = scmp.ne.s32.totalorder %s110, %s124
      %p126 = scmp.eq.s32.totalorder %s37, 0
      %p127 = por %p125, %p126
      %s129 = sadd.s32 %s128, 1
      %p132 = scmp.eq.s32.totalorder %s31, 1
      %p133 = scmp.ne.s32.totalorder %s128, %s130
      %p134 = scmp.eq.s32.totalorder %s31, 0
      %p135 = por %p133, %p134
      %p136 = scmp.ne.s32.totalorder %s128, %s130
      %p137 = scmp.eq.s32.totalorder %s36, 1
      %p138 = por %p136, %p137
      %p139 = scmp.ne.s32.totalorder %s130, %s131
      %p140 = scmp.eq.s32.totalorder %s36, 0
      %p141 = por %p139, %p140
      %p142 = scmp.ne.s32.totalorder %s130, %s131
      %p143 = scmp.eq.s32.totalorder %s37, 1
      %p144 = por %p142, %p143
      %p146 = scmp.ne.s32.totalorder %s131, %s145
      %p147 = scmp.eq.s32.totalorder %s37, 0
      %p148 = por %p146, %p147
      %s150 = sadd.s32 %s149, 1
      %p153 = scmp.eq.s32.totalorder %s31, 1
      %p154 = scmp.ne.s32.totalorder %s149, %s151
      %p155 = scmp.eq.s32.totalorder %s31, 0
      %p156 = por %p154, %p155
      %p157 = scmp.ne.s32.totalorder %s149, %s151
      %p158 = scmp.eq.s32.totalorder %s36, 1
      %p159 = por %p157, %p158
      %p160 = scmp.ne.s32.totalorder %s151, %s152
      %p161 = scmp.eq.s32.totalorder %s36, 0
      %p162 = por %p160, %p161
      %p163 = scmp.ne.s32.totalorder %s151, %s152
      %p164 = scmp.eq.s32.totalorder %s37, 1
      %p165 = por %p163, %p164
      %p167 = scmp.ne.s32.totalorder %s152, %s166
      %p168 = scmp.eq.s32.totalorder %s37, 0
      %p169 = por %p167, %p168
      %s171 = sadd.s32 %s170, 1
      %p174 = scmp.eq.s32.totalorder %s31, 1
      %p175 = scmp.ne.s32.totalorder %s170, %s172
      %p176 = scmp.eq.s32.totalorder %s31, 0
      %p177 = por %p175, %p176
      %p178 = scmp.ne.s32.totalorder %s170, %s172
      %p179 = scmp.eq.s32.totalorder %s36, 1
      %p180 = por %p178, %p179
      %p181 = scmp.ne.s32.totalorder %s172, %s173
      %p182 = scmp.eq.s32.totalorder %s36, 0
      %p183 = por %p181, %p182
      %p184 = scmp.ne.s32.totalorder %s172, %s173
      %p185 = scmp.eq.s32.totalorder %s37, 1
      %p186 = por %p184, %p185
      %p188 = scmp.ne.s32.totalorder %s173, %s187
      %p189 = scmp.eq.s32.totalorder %s37, 0
      %p190 = por %p188, %p189
      %s192 = sadd.s32 %s191, 1
      %p195 = scmp.eq.s32.totalorder %s31, 1
      %p196 = scmp.ne.s32.totalorder %s191, %s193
      %p197 = scmp.eq.s32.totalorder %s31, 0
      %p198 = por %p196, %p197
      %p199 = scmp.ne.s32.totalorder %s191, %s193
      %p200 = scmp.eq.s32.totalorder %s36, 1
      %p201 = por %p199, %p200
      %p202 = scmp.ne.s32.totalorder %s193, %s194
      %p203 = scmp.eq.s32.totalorder %s36, 0
      %p204 = por %p202, %p203
      %p205 = scmp.ne.s32.totalorder %s193, %s194
      %p206 = scmp.eq.s32.totalorder %s37, 1
      %p207 = por %p205, %p206
      %p209 = scmp.ne.s32.totalorder %s194, %s208
      %p210 = scmp.eq.s32.totalorder %s37, 0
      %p211 = por %p209, %p210
      %s213 = sadd.s32 %s212, 1
      %p216 = scmp.eq.s32.totalorder %s31, 1
      %p217 = scmp.ne.s32.totalorder %s212, %s214
      %p218 = scmp.eq.s32.totalorder %s31, 0
      %p219 = por %p217, %p218
      %p220 = scmp.ne.s32.totalorder %s212, %s214
      %p221 = scmp.eq.s32.totalorder %s36, 1
      %p222 = por %p220, %p221
      %p223 = scmp.ne.s32.totalorder %s214, %s215
      %p224 = scmp.eq.s32.totalorder %s36, 0
      %p225 = por %p223, %p224
      %p226 = scmp.ne.s32.totalorder %s214, %s215
      %p227 = scmp.eq.s32.totalorder %s37, 1
      %p228 = por %p226, %p227
      %p230 = scmp.ne.s32.totalorder %s215, %s229
      %p231 = scmp.eq.s32.totalorder %s37, 0
      %p232 = por %p230, %p231
      %s234 = sadd.s32 %s233, 1
      %p237 = scmp.eq.s32.totalorder %s31, 1
      %p238 = scmp.ne.s32.totalorder %s233, %s235
      %p239 = scmp.eq.s32.totalorder %s31, 0
      %p240 = por %p238, %p239
      %p241 = scmp.ne.s32.totalorder %s233, %s235
      %p242 = scmp.eq.s32.totalorder %s36, 1
      %p243 = por %p241, %p242
      %p244 = scmp.ne.s32.totalorder %s235, %s236
      %p245 = scmp.eq.s32.totalorder %s36, 0
      %p246 = por %p244, %p245
      %p247 = scmp.ne.s32.totalorder %s235, %s236
      %p248 = scmp.eq.s32.totalorder %s37, 1
      %p249 = por %p247, %p248
      %p251 = scmp.ne.s32.totalorder %s236, %s250
      %p252 = scmp.eq.s32.totalorder %s37, 0
      %p253 = por %p251, %p252
      %s255 = sadd.s32 %s254, 1
      %p258 = scmp.eq.s32.totalorder %s31, 1
      %p259 = scmp.ne.s32.totalorder %s254, %s256
      %p260 = scmp.eq.s32.totalorder %s31, 0
      %p261 = por %p259, %p260
      %p262 = scmp.ne.s32.totalorder %s254, %s256
      %p263 = scmp.eq.s32.totalorder %s36, 1
      %p264 = por %p262, %p263
      %p265 = scmp.ne.s32.totalorder %s256, %s257
      %p266 = scmp.eq.s32.totalorder %s36, 0
      %p267 = por %p265, %p266
      %p268 = scmp.ne.s32.totalorder %s256, %s257
      %p269 = scmp.eq.s32.totalorder %s37, 1
      %p270 = por %p268, %p269
      %p272 = scmp.ne.s32.totalorder %s257, %s271
      %p273 = scmp.eq.s32.totalorder %s37, 0
      %p274 = por %p272, %p273
      %s276 = sadd.s32 %s275, 1
      %p279 = scmp.eq.s32.totalorder %s31, 1
      %p280 = scmp.ne.s32.totalorder %s275, %s277
      %p281 = scmp.eq.s32.totalorder %s31, 0
      %p282 = por %p280, %p281
      %p283 = scmp.ne.s32.totalorder %s275, %s277
      %p284 = scmp.eq.s32.totalorder %s36, 1
      %p285 = por %p283, %p284
      %p286 = scmp.ne.s32.totalorder %s277, %s278
      %p287 = scmp.eq.s32.totalorder %s36, 0
      %p288 = por %p286, %p287
      %p289 = scmp.ne.s32.totalorder %s277, %s278
      %p290 = scmp.eq.s32.totalorder %s37, 1
      %p291 = por %p289, %p290
      %p293 = scmp.ne.s32.totalorder %s278, %s292
      %p294 = scmp.eq.s32.totalorder %s37, 0
      %p295 = por %p293, %p294
      %s297 = sadd.s32 %s296, 1
      %p300 = scmp.eq.s32.totalorder %s31, 1
      %p301 = scmp.ne.s32.totalorder %s296, %s298
      %p302 = scmp.eq.s32.totalorder %s31, 0
      %p303 = por %p301, %p302
      %p304 = scmp.ne.s32.totalorder %s296, %s298
      %p305 = scmp.eq.s32.totalorder %s36, 1
      %p306 = por %p304, %p305
      %p307 = scmp.ne.s32.totalorder %s298, %s299
      %p308 = scmp.eq.s32.totalorder %s36, 0
      %p309 = por %p307, %p308
      %p310 = scmp.ne.s32.totalorder %s298, %s299
      %p311 = scmp.eq.s32.totalorder %s37, 1
      %p312 = por %p310, %p311
      %p314 = scmp.ne.s32.totalorder %s299, %s313
      %p315 = scmp.eq.s32.totalorder %s37, 0
      %p316 = por %p314, %p315
      %s318 = sadd.s32 %s317, 1
      %p321 = scmp.eq.s32.totalorder %s31, 1
      %p322 = scmp.ne.s32.totalorder %s317, %s319
      %p323 = scmp.eq.s32.totalorder %s31, 0
      %p324 = por %p322, %p323
      %p325 = scmp.ne.s32.totalorder %s317, %s319
      %p326 = scmp.eq.s32.totalorder %s36, 1
      %p327 = por %p325, %p326
      %p328 = scmp.ne.s32.totalorder %s319, %s320
      %p329 = scmp.eq.s32.totalorder %s36, 0
      %p330 = por %p328, %p329
      %p331 = scmp.ne.s32.totalorder %s319, %s320
      %p332 = scmp.eq.s32.totalorder %s37, 1
      %p333 = por %p331, %p332
      %p335 = scmp.ne.s32.totalorder %s320, %s334
      %p336 = scmp.eq.s32.totalorder %s37, 0
      %p337 = por %p335, %p336
      %s339 = sadd.s32 %s338, 1
      %p342 = scmp.eq.s32.totalorder %s31, 1
      %p343 = scmp.ne.s32.totalorder %s338, %s340
      %p344 = scmp.eq.s32.totalorder %s31, 0
      %p345 = por %p343, %p344
      %p346 = scmp.ne.s32.totalorder %s338, %s340
      %p347 = scmp.eq.s32.totalorder %s36, 1
      %p348 = por %p346, %p347
      %p349 = scmp.ne.s32.totalorder %s340, %s341
      %p350 = scmp.eq.s32.totalorder %s36, 0
      %p351 = por %p349, %p350
      %p352 = scmp.ne.s32.totalorder %s340, %s341
      %p353 = scmp.eq.s32.totalorder %s37, 1
      %p354 = por %p352, %p353
      %p356 = scmp.ne.s32.totalorder %s341, %s355
      %p357 = scmp.eq.s32.totalorder %s37, 0
      %p358 = por %p356, %p357
      %s360 = sadd.s32 %s359, 1
      %p363 = scmp.eq.s32.totalorder %s31, 1
      %p364 = scmp.ne.s32.totalorder %s359, %s361
      %p365 = scmp.eq.s32.totalorder %s31, 0
      %p366 = por %p364, %p365
      %p367 = scmp.ne.s32.totalorder %s359, %s361
      %p368 = scmp.eq.s32.totalorder %s36, 1
      %p369 = por %p367, %p368
      %p370 = scmp.ne.s32.totalorder %s361, %s362
      %p371 = scmp.eq.s32.totalorder %s36, 0
      %p372 = por %p370, %p371
      %p373 = scmp.ne.s32.totalorder %s361, %s362
      %p374 = scmp.eq.s32.totalorder %s37, 1
      %p375 = por %p373, %p374
      %p377 = scmp.ne.s32.totalorder %s362, %s376
      %p378 = scmp.eq.s32.totalorder %s37, 0
      %p379 = por %p377, %p378
      %s381 = sadd.s32 %s380, 1
      %p384 = scmp.eq.s32.totalorder %s31, 1
      %p385 = scmp.ne.s32.totalorder %s380, %s382
      %p386 = scmp.eq.s32.totalorder %s31, 0
      %p387 = por %p385, %p386
      %p388 = scmp.ne.s32.totalorder %s380, %s382
      %p389 = scmp.eq.s32.totalorder %s36, 1
      %p390 = por %p388, %p389
      %p391 = scmp.ne.s32.totalorder %s382, %s383
      %p392 = scmp.eq.s32.totalorder %s36, 0
      %p393 = por %p391, %p392
      %p394 = scmp.ne.s32.totalorder %s382, %s383
      %p395 = scmp.eq.s32.totalorder %s37, 1
      %p396 = por %p394, %p395
      %p398 = scmp.ne.s32.totalorder %s383, %s397
      %p399 = scmp.eq.s32.totalorder %s37, 0
      %p400 = por %p398, %p399
      %s402 = sadd.s32 %s401, 1
      %p405 = scmp.eq.s32.totalorder %s31, 1
      %p406 = scmp.ne.s32.totalorder %s401, %s403
      %p407 = scmp.eq.s32.totalorder %s31, 0
      %p408 = por %p406, %p407
      %p409 = scmp.ne.s32.totalorder %s401, %s403
      %p410 = scmp.eq.s32.totalorder %s36, 1
      %p411 = por %p409, %p410
      %p412 = scmp.ne.s32.totalorder %s403, %s404
      %p413 = scmp.eq.s32.totalorder %s36, 0
      %p414 = por %p412, %p413
      %p415 = scmp.ne.s32.totalorder %s403, %s404
      %p416 = scmp.eq.s32.totalorder %s37, 1
      %p417 = por %p415, %p416
      %p419 = scmp.ne.s32.totalorder %s404, %s418
      %p420 = scmp.eq.s32.totalorder %s37, 0
      %p421 = por %p419, %p420
      %s422 = ssub.s32 %s38, %s50
      %s423 = ssub.s32 %s39, %s46
      %s424 = sor.u32 %s422, %s423
      %p425 = scmp.eq.s32.totalorder %s424, 0
      %s427 = sadd.s32 %s426, 1
      %s428 = scalar_select %p425, %s426, %s427
      %p431 = pneg %p425
      %p432 = scmp.eq.s32.totalorder %s31, 1
      %p433 = por %p431, %p432
      %p434 = scmp.ne.s32.totalorder %s426, %s429
      %p435 = scmp.eq.s32.totalorder %s31, 0
      %p436 = por %p434, %p435
      %p437 = scmp.ne.s32.totalorder %s426, %s429
      %p438 = scmp.eq.s32.totalorder %s36, 1
      %p439 = por %p437, %p438
      %p440 = scmp.ne.s32.totalorder %s429, %s430
      %p441 = scmp.eq.s32.totalorder %s36, 0
      %p442 = por %p440, %p441
      %p443 = scmp.ne.s32.totalorder %s429, %s430
      %p444 = scmp.eq.s32.totalorder %s37, 1
      %p445 = por %p443, %p444
      %p447 = scmp.ne.s32.totalorder %s430, %s446
      %p448 = scmp.eq.s32.totalorder %s37, 0
      %p449 = por %p447, %p448
      %s450 = ssub.s32 %s38, %s50
      %s451 = ssub.s32 %s39, %s46
      %s452 = sor.u32 %s450, %s451
      %p453 = scmp.eq.s32.totalorder %s452, 0
      %s455 = sadd.s32 %s454, 1
      %s456 = scalar_select %p453, %s454, %s455
      %p459 = pneg %p453
      %p460 = scmp.eq.s32.totalorder %s31, 1
      %p461 = por %p459, %p460
      %p462 = scmp.ne.s32.totalorder %s454, %s457
      %p463 = scmp.eq.s32.totalorder %s31, 0
      %p464 = por %p462, %p463
      %p465 = scmp.ne.s32.totalorder %s454, %s457
      %p466 = scmp.eq.s32.totalorder %s36, 1
      %p467 = por %p465, %p466
      %p468 = scmp.ne.s32.totalorder %s457, %s458
      %p469 = scmp.eq.s32.totalorder %s36, 0
      %p470 = por %p468, %p469
      %p471 = scmp.ne.s32.totalorder %s457, %s458
      %p472 = scmp.eq.s32.totalorder %s37, 1
      %p473 = por %p471, %p472
      %p475 = scmp.ne.s32.totalorder %s458, %s474
      %p476 = scmp.eq.s32.totalorder %s37, 0
      %p477 = por %p475, %p476
      %p478 = scmp.le.s32.totalorder 1, %s31
      %p479 = scmp.lt.s32.totalorder %s31, 3
      %p480 = pnand %p478, %p479
      %p481 = pneg %p480
      // Predicated region
      $region9: #{tpu_custom_call.1} parent=5 // pred_check
        _
      $region10: #{tpu_custom_call.1} parent=5 // pred_check_branch
        %483 = sbr.rel (%p480) target = $region12
      $region11: #{tpu_custom_call.1} parent=5 // pred_region
        %s484 = ssub.s32 %s31, 1
        // Predicated region
        $region13: #{tpu_custom_call.1} parent=11 // pred_check
          %p485 = pneg %p120
        $region14: #{tpu_custom_call.1} parent=11 // pred_check_branch
          %487 = sbr.rel (%p485) target = $region16
        $region15: #{tpu_custom_call.1} parent=11 // pred_region
          _
        $region16: #{tpu_custom_call.1} parent=11 // pred_fallthru
          _
        // Predicated region
        $region17: #{tpu_custom_call.1} parent=11 // pred_check
          %p488 = pneg %p141
        $region18: #{tpu_custom_call.1} parent=11 // pred_check_branch
          %490 = sbr.rel (%p488) target = $region20
        $region19: #{tpu_custom_call.1} parent=11 // pred_region
          _
        $region20: #{tpu_custom_call.1} parent=11 // pred_fallthru
          _
        // Predicated region
        $region21: #{tpu_custom_call.1} parent=11 // pred_check
          %p491 = pneg %p162
        $region22: #{tpu_custom_call.1} parent=11 // pred_check_branch
          %493 = sbr.rel (%p491) target = $region24
        $region23: #{tpu_custom_call.1} parent=11 // pred_region
          _
        $region24: #{tpu_custom_call.1} parent=11 // pred_fallthru
          _
        // Predicated region
        $region25: #{tpu_custom_call.1} parent=11 // pred_check
          %p494 = pneg %p183
        $region26: #{tpu_custom_call.1} parent=11 // pred_check_branch
          %496 = sbr.rel (%p494) target = $region28
        $region27: #{tpu_custom_call.1} parent=11 // pred_region
          _
        $region28: #{tpu_custom_call.1} parent=11 // pred_fallthru
          _
        // Predicated region
        $region29: #{tpu_custom_call.1} parent=11 // pred_check
          %p497 = pneg %p204
        $region30: #{tpu_custom_call.1} parent=11 // pred_check_branch
          %499 = sbr.rel (%p497) target = $region32
        $region31: #{tpu_custom_call.1} parent=11 // pred_region
          _
        $region32: #{tpu_custom_call.1} parent=11 // pred_fallthru
          _
        // Predicated region
        $region33: #{tpu_custom_call.1} parent=11 // pred_check
          %p500 = pneg %p225
        $region34: #{tpu_custom_call.1} parent=11 // pred_check_branch
          %502 = sbr.rel (%p500) target = $region36
        $region35: #{tpu_custom_call.1} parent=11 // pred_region
          _
        $region36: #{tpu_custom_call.1} parent=11 // pred_fallthru
          _
        // Predicated region
        $region37: #{tpu_custom_call.1} parent=11 // pred_check
          %p503 = pneg %p246
        $region38: #{tpu_custom_call.1} parent=11 // pred_check_branch
          %505 = sbr.rel (%p503) target = $region40
        $region39: #{tpu_custom_call.1} parent=11 // pred_region
          _
        $region40: #{tpu_custom_call.1} parent=11 // pred_fallthru
          _
        // Predicated region
        $region41: #{tpu_custom_call.1} parent=11 // pred_check
          %p506 = pneg %p267
        $region42: #{tpu_custom_call.1} parent=11 // pred_check_branch
          %508 = sbr.rel (%p506) target = $region44
        $region43: #{tpu_custom_call.1} parent=11 // pred_region
          _
        $region44: #{tpu_custom_call.1} parent=11 // pred_fallthru
          _
        // Predicated region
        $region45: #{tpu_custom_call.1} parent=11 // pred_check
          %p509 = pneg %p288
        $region46: #{tpu_custom_call.1} parent=11 // pred_check_branch
          %511 = sbr.rel (%p509) target = $region48
        $region47: #{tpu_custom_call.1} parent=11 // pred_region
          _
        $region48: #{tpu_custom_call.1} parent=11 // pred_fallthru
          _
        // Predicated region
        $region49: #{tpu_custom_call.1} parent=11 // pred_check
          %p512 = pneg %p309
        $region50: #{tpu_custom_call.1} parent=11 // pred_check_branch
          %514 = sbr.rel (%p512) target = $region52
        $region51: #{tpu_custom_call.1} parent=11 // pred_region
          _
        $region52: #{tpu_custom_call.1} parent=11 // pred_fallthru
          _
        // Predicated region
        $region53: #{tpu_custom_call.1} parent=11 // pred_check
          %p515 = pneg %p330
        $region54: #{tpu_custom_call.1} parent=11 // pred_check_branch
          %517 = sbr.rel (%p515) target = $region56
        $region55: #{tpu_custom_call.1} parent=11 // pred_region
          _
        $region56: #{tpu_custom_call.1} parent=11 // pred_fallthru
          _
        // Predicated region
        $region57: #{tpu_custom_call.1} parent=11 // pred_check
          %p518 = pneg %p351
        $region58: #{tpu_custom_call.1} parent=11 // pred_check_branch
          %520 = sbr.rel (%p518) target = $region60
        $region59: #{tpu_custom_call.1} parent=11 // pred_region
          _
        $region60: #{tpu_custom_call.1} parent=11 // pred_fallthru
          _
        // Predicated region
        $region61: #{tpu_custom_call.1} parent=11 // pred_check
          %p521 = pneg %p372
        $region62: #{tpu_custom_call.1} parent=11 // pred_check_branch
          %523 = sbr.rel (%p521) target = $region64
        $region63: #{tpu_custom_call.1} parent=11 // pred_region
          _
        $region64: #{tpu_custom_call.1} parent=11 // pred_fallthru
          _
        // Predicated region
        $region65: #{tpu_custom_call.1} parent=11 // pred_check
          %p524 = pneg %p393
        $region66: #{tpu_custom_call.1} parent=11 // pred_check_branch
          %526 = sbr.rel (%p524) target = $region68
        $region67: #{tpu_custom_call.1} parent=11 // pred_region
          _
        $region68: #{tpu_custom_call.1} parent=11 // pred_fallthru
          _
        // Predicated region
        $region69: #{tpu_custom_call.1} parent=11 // pred_check
          %p527 = pneg %p414
        $region70: #{tpu_custom_call.1} parent=11 // pred_check_branch
          %529 = sbr.rel (%p527) target = $region72
        $region71: #{tpu_custom_call.1} parent=11 // pred_region
          _
        $region72: #{tpu_custom_call.1} parent=11 // pred_fallthru
          _
      $region12: #{tpu_custom_call.1} parent=5 // pred_fallthru
        _
      %p530 = scmp.lt.s32.totalorder %s31, 2
      // Predicated region
      $region73: #{tpu_custom_call.1} parent=5 // pred_check
        %p531 = pneg %p530
      $region74: #{tpu_custom_call.1} parent=5 // pred_check_branch
        %533 = sbr.rel (%p531) target = $region76
      $region75: #{tpu_custom_call.1} parent=5 // pred_region
        // Predicated region
        $region77: #{tpu_custom_call.1} parent=75 // pred_check
          %p534 = pneg %p65
        $region78: #{tpu_custom_call.1} parent=75 // pred_check_branch
          %536 = sbr.rel (%p534) target = $region80
        $region79: #{tpu_custom_call.1} parent=75 // pred_region
          %s537 = smul.u32 2, %s39
          %p538 = scmp.lt.s32.totalorder %s38, 1
          %s539 = scalar_select %p538, %s38, 1
          %p540 = scmp.lt.s32.totalorder %s537, 1
          %s541 = scalar_select %p540, %s537, 1
          %s542 = smul.addr %s539, 4
          %s543 = sadd.s32 %s541, %s542
          %s544 = smul.addr %s543, 8
          %s545 = scalar_lea.vmem %s0, %s544
          %s546 = smul.u32 2, %s39
        $region80: #{tpu_custom_call.1} parent=75 // pred_fallthru
          _
        // Predicated region
        $region81: #{tpu_custom_call.1} parent=75 // pred_check
          %p547 = pneg %p93
        $region82: #{tpu_custom_call.1} parent=75 // pred_check_branch
          %549 = sbr.rel (%p547) target = $region84
        $region83: #{tpu_custom_call.1} parent=75 // pred_region
          %s550 = smul.u32 2, %s39
          %p551 = scmp.lt.s32.totalorder %s38, 1
          %s552 = scalar_select %p551, %s38, 1
          %p553 = scmp.lt.s32.totalorder %s550, 1
          %s554 = scalar_select %p553, %s550, 1
          %s555 = smul.addr %s552, 2
          %s556 = sadd.s32 %s554, %s555
          %s557 = smul.addr %s556, 4
          %s558 = scalar_lea.vmem %s1, %s557
          %s559 = smul.u32 2, %s39
        $region84: #{tpu_custom_call.1} parent=75 // pred_fallthru
          _
      $region76: #{tpu_custom_call.1} parent=5 // pred_fallthru
        _
      %p560 = scmp.le.s32.totalorder 1, %s31
      %p561 = scmp.lt.s32.totalorder %s31, 3
      %p562 = pnand %p560, %p561
      %p563 = pneg %p562
      // Predicated region
      $region85: #{tpu_custom_call.1} parent=5 // pred_check
        _
      $region86: #{tpu_custom_call.1} parent=5 // pred_check_branch
        %565 = sbr.rel (%p562) target = $region88
      $region87: #{tpu_custom_call.1} parent=5 // pred_region
        %s566 = ssub.s32 %s31, 1
        %s567 = smul.u32 2, %s41
        %p568 = scmp.lt.s32.totalorder %s40, 1
        %s569 = scalar_select %p568, %s40, 1
        %p570 = scmp.lt.s32.totalorder %s567, 1
        %s571 = scalar_select %p570, %s567, 1
        %s572 = smul.addr %s569, 4
        %s573 = sadd.s32 %s571, %s572
        %s574 = smul.addr %s573, 8
        %s575 = scalar_lea.vmem %s0, %s574
        %p576 = pneg %p71
        %p577 = pneg %p68
        %s578 = smul.u32 2, %s41
        %p579 = scmp.lt.s32.totalorder %s40, 1
        %s580 = scalar_select %p579, %s40, 1
        %p581 = scmp.lt.s32.totalorder %s578, 1
        %s582 = scalar_select %p581, %s578, 1
        %s583 = smul.addr %s580, 2
        %s584 = sadd.s32 %s582, %s583
        %s585 = smul.addr %s584, 4
        %s586 = scalar_lea.vmem %s1, %s585
        %p587 = pneg %p99
        %p588 = pneg %p96
        %p589 = pneg %p120
        %p590 = pneg %p117
        %p591 = pneg %p141
        %p592 = pneg %p138
        %p593 = pneg %p162
        %p594 = pneg %p159
        %p595 = pneg %p183
        %p596 = pneg %p180
        %p597 = pneg %p204
        %p598 = pneg %p201
        %p599 = pneg %p225
        %p600 = pneg %p222
        %p601 = pneg %p246
        %p602 = pneg %p243
        %p603 = pneg %p267
        %p604 = pneg %p264
        %p605 = pneg %p288
        %p606 = pneg %p285
        %p607 = pneg %p309
        %p608 = pneg %p306
        %p609 = pneg %p330
        %p610 = pneg %p327
        %p611 = pneg %p351
        %p612 = pneg %p348
        %p613 = pneg %p372
        %p614 = pneg %p369
        %p615 = pneg %p393
        %p616 = pneg %p390
        %p617 = pneg %p414
        %p618 = pneg %p411
        %p619 = pneg %p442
        %p620 = pneg %p439
        %s621 = sand.u32 %s429, 1
        %s622 = scalar_lea.sflag [#allocation3], %s621
        %s623 = sand.u32 %s429, 1
        %s624 = smul.addr %s623, 16
        %s625 = scalar_lea.vmem [#allocation2], %s624
        %p626 = pneg %p470
        %p627 = pneg %p467
        %s628 = sand.u32 %s457, 1
        %s629 = scalar_lea.sflag [#allocation5], %s628
        %s630 = sand.u32 %s457, 1
        %s631 = smul.addr %s630, 32
        %s632 = scalar_lea.vmem [#allocation4], %s631
        %s633 = smul.u32 2, %s41
        %p634 = scmp.lt.s32.totalorder %s40, 1
        %s635 = scalar_select %p634, %s40, 1
        %p636 = scmp.lt.s32.totalorder %s633, 1
        %s637 = scalar_select %p636, %s633, 1
        %s638 = smul.addr %s635, 4
        %s639 = sadd.s32 %s637, %s638
        %s640 = smul.addr %s639, 8
        %s641 = scalar_lea.vmem %s0, %s640
        %s642 = smul.u32 2, %s41
        %s643 = smul.u32 2, %s41
        %p644 = scmp.lt.s32.totalorder %s40, 1
        %s645 = scalar_select %p644, %s40, 1
        %p646 = scmp.lt.s32.totalorder %s643, 1
        %s647 = scalar_select %p646, %s643, 1
        %s648 = smul.addr %s645, 2
        %s649 = sadd.s32 %s647, %s648
        %s650 = smul.addr %s649, 4
        %s651 = scalar_lea.vmem %s1, %s650
        %s652 = smul.u32 2, %s41
        %s653 = smul.u32 2, %s41
        %s654 = smul.u32 2, %s41
        %v655 = vld [vmem:[%s641] sm:$0xff]
        %v656 = vld [vmem:[%s641 + $0x8] sm:$0xff]
        %v657 = vld [vmem:[%s641 + $0x10] sm:$0xff]
        %v658 = vld [vmem:[%s641 + $0x18] sm:$0xff]
        %v659 = vld [vmem:[%s651] sm:$0xff]
        %v660 = vld [vmem:[%s2] sm:$0xff]
        %v661 = vld [vmem:[%s3] sm:$0xff]
        %663 = vset.pattern.permute.xlu0 0
        %664 = vperm.xlu0 %663, %v661
        %v665 = vpop.permute.xlu0 %664
        %vm667 = vcmask 130048
        %v669 = vsel %vm667, %v660, 0
        %671 = vmatprep.subr.mxu0 0.0
        %672 = vmatpush1.msra.mxu0 0.0
        %673 = vmatprep.subr.mxu0 0.0
        %674 = vmatpush1.msra.mxu0 0.0
        %675 = vmatprep.subr.mxu0 0.0
        %676 = vmatpush1.msra.mxu0 0.0
        %677 = vmatprep.subr.mxu0 0.0
        %678 = vmatpush1.msra.mxu0 0.0
        %679 = vmatprep.subr.mxu0 0.0
        %680 = vmatpush1.msra.mxu0 0.0
        %681 = vmatprep.subr.mxu0 0.0
        %682 = vmatpush1.msra.mxu0 0.0
        %683 = vmatprep.subr.mxu0 0.0
        %684 = vmatpush1.msra.mxu0 0.0
        %685 = vmatprep.subr.mxu0 0.0
        %686 = vmatpush1.msra.mxu0 0.0
        %687 = vmatprep.subr.mxu0 0.0
        %688 = vmatpush1.msra.mxu0 0.0
        %689 = vmatprep.subr.mxu0 0.0
        %690 = vmatpush1.msra.mxu0 0.0
        %691 = vmatprep.subr.mxu0 0.0
        %692 = vmatpush1.msra.mxu0 0.0
        %693 = vmatprep.subr.mxu0 0.0
        %694 = vmatpush1.msra.mxu0 0.0
        %695 = vmatprep.subr.mxu0 0.0
        %696 = vmatpush1.msra.mxu0 0.0
        %697 = vmatprep.subr.mxu0 0.0
        %698 = vmatpush1.msra.mxu0 0.0
        %699 = vmatprep.subr.mxu0 %v658
        %700 = vmatpush1.msra.mxu0 %v657
        %701 = vmatprep.subr.mxu0 %v656
        %702 = vmatpush1.msra.mxu0 %v655
        %703 = vmatprep.subr.mxu0 0.0
        %704 = vmatpush2.msra.mxu0 0.0
        %705 = vmatprep.subr.mxu0 0.0
        %706 = vmatpush2.msra.mxu0 0.0
        %707 = vmatprep.subr.mxu0 0.0
        %708 = vmatpush2.msra.mxu0 0.0
        %709 = vmatprep.subr.mxu0 0.0
        %710 = vmatpush2.msra.mxu0 0.0
        %711 = vmatprep.subr.mxu0 0.0
        %712 = vmatpush2.msra.mxu0 0.0
        %713 = vmatprep.subr.mxu0 0.0
        %714 = vmatpush2.msra.mxu0 0.0
        %715 = vmatprep.subr.mxu0 0.0
        %716 = vmatpush2.msra.mxu0 0.0
        %717 = vmatprep.subr.mxu0 0.0
        %718 = vmatpush2.msra.mxu0 0.0
        %719 = vmatprep.subr.mxu0 0.0
        %720 = vmatpush2.msra.mxu0 0.0
        %721 = vmatprep.subr.mxu0 0.0
        %722 = vmatpush2.msra.mxu0 0.0
        %723 = vmatprep.subr.mxu0 0.0
        %724 = vmatpush2.msra.mxu0 0.0
        %725 = vmatprep.subr.mxu0 0.0
        %726 = vmatpush2.msra.mxu0 0.0
        %727 = vmatprep.subr.mxu0 0.0
        %728 = vmatpush2.msra.mxu0 0.0
        %729 = vmatprep.subr.mxu0 0.0
        %730 = vmatpush2.msra.mxu0 0.0
        %731 = vmatprep.subr.mxu0 0.0
        %732 = vmatpush2.msra.mxu0 0.0
        %733 = vmatprep.subr.mxu0 0.0
        %734 = vmatpush2.msra.mxu0 0.0
        %735 = vmatprep.mubr.f32.mxu0 0.0
        %736 = vmatmul.mubr.f32.gmra.mxu0 %v669
        %v737 = vpop.f32.mrf.mxu0
        %v738 = vadd.f32 %v665, %v737
        %v739 = vpop.f32.mrf.mxu0
        %v740 = vadd.f32 %v665, %v739
        %741 = vdwg.mxu0
        %v742 = vmax.f32 %v738, 0.0
        %v743 = vmax.f32 %v740, 0.0
        %v744 = vld [vmem:[%s4] sm:$0xf]
        %v745 = vld [vmem:[%s5] sm:$0xf]
        %747 = vset.pattern.permute.xlu0 0
        %748 = vperm.xlu0 %747, %v745
        %v749 = vpop.permute.xlu0 %748
        %vm751 = vcmask 64512
        %v753 = vsel %vm751, %v744, 0
        %755 = vmatprep.subr.mxu0 0.0
        %756 = vmatpush1.msra.mxu0 0.0
        %757 = vmatprep.subr.mxu0 0.0
        %758 = vmatpush1.msra.mxu0 0.0
        %759 = vmatprep.subr.mxu0 0.0
        %760 = vmatpush1.msra.mxu0 0.0
        %761 = vmatprep.subr.mxu0 0.0
        %762 = vmatpush1.msra.mxu0 0.0
        %763 = vmatprep.subr.mxu0 0.0
        %764 = vmatpush1.msra.mxu0 0.0
        %765 = vmatprep.subr.mxu0 0.0
        %766 = vmatpush1.msra.mxu0 0.0
        %767 = vmatprep.subr.mxu0 0.0
        %768 = vmatpush1.msra.mxu0 0.0
        %769 = vmatprep.subr.mxu0 0.0
        %770 = vmatpush1.msra.mxu0 0.0
        %771 = vmatprep.subr.mxu0 0.0
        %772 = vmatpush1.msra.mxu0 0.0
        %773 = vmatprep.subr.mxu0 0.0
        %774 = vmatpush1.msra.mxu0 0.0
        %775 = vmatprep.subr.mxu0 0.0
        %776 = vmatpush1.msra.mxu0 0.0
        %777 = vmatprep.subr.mxu0 0.0
        %778 = vmatpush1.msra.mxu0 0.0
        %779 = vmatprep.subr.mxu0 0.0
        %780 = vmatpush1.msra.mxu0 0.0
        %781 = vmatprep.subr.mxu0 0.0
        %782 = vmatpush1.msra.mxu0 0.0
        %783 = vmatprep.subr.mxu0 0.0
        %784 = vmatpush1.msra.mxu0 0.0
        %785 = vmatprep.subr.mxu0 %v743
        %786 = vmatpush1.msra.mxu0 %v742
        %787 = vmatprep.subr.mxu0 0.0
        %788 = vmatpush2.msra.mxu0 0.0
        %789 = vmatprep.subr.mxu0 0.0
        %790 = vmatpush2.msra.mxu0 0.0
        %791 = vmatprep.subr.mxu0 0.0
        %792 = vmatpush2.msra.mxu0 0.0
        %793 = vmatprep.subr.mxu0 0.0
        %794 = vmatpush2.msra.mxu0 0.0
        %795 = vmatprep.subr.mxu0 0.0
        %796 = vmatpush2.msra.mxu0 0.0
        %797 = vmatprep.subr.mxu0 0.0
        %798 = vmatpush2.msra.mxu0 0.0
        %799 = vmatprep.subr.mxu0 0.0
        %800 = vmatpush2.msra.mxu0 0.0
        %801 = vmatprep.subr.mxu0 0.0
        %802 = vmatpush2.msra.mxu0 0.0
        %803 = vmatprep.subr.mxu0 0.0
        %804 = vmatpush2.msra.mxu0 0.0
        %805 = vmatprep.subr.mxu0 0.0
        %806 = vmatpush2.msra.mxu0 0.0
        %807 = vmatprep.subr.mxu0 0.0
        %808 = vmatpush2.msra.mxu0 0.0
        %809 = vmatprep.subr.mxu0 0.0
        %810 = vmatpush2.msra.mxu0 0.0
        %811 = vmatprep.subr.mxu0 0.0
        %812 = vmatpush2.msra.mxu0 0.0
        %813 = vmatprep.subr.mxu0 0.0
        %814 = vmatpush2.msra.mxu0 0.0
        %815 = vmatprep.subr.mxu0 0.0
        %816 = vmatpush2.msra.mxu0 0.0
        %817 = vmatprep.subr.mxu0 0.0
        %818 = vmatpush2.msra.mxu0 0.0
        %819 = vmatprep.mubr.f32.mxu0 0.0
        %820 = vmatmul.mubr.f32.gmra.mxu0 %v753
        %v821 = vpop.f32.mrf.mxu0
        %v822 = vadd.f32 %v749, %v821
        %v823 = vpop.f32.mrf.mxu0
        %v824 = vadd.f32 %v749, %v823
        %825 = vdwg.mxu0
        %v826 = vmax.f32 %v822, 0.0
        %v827 = vmax.f32 %v824, 0.0
        %v828 = vld [vmem:[%s6] sm:$0xff]
        %v829 = vld [vmem:[%s7] sm:$0xff]
        %831 = vset.pattern.permute.xlu0 0
        %832 = vperm.xlu0 %831, %v829
        %v833 = vpop.permute.xlu0 %832
        %vm835 = vcmask 31744
        %v837 = vsel %vm835, %v828, 0
        %vm839 = vcmask 1043456
        %v841 = vsel %vm839, %v826, 0
        %v844 = vsel %vm839, %v827, 0
        %846 = vmatprep.subr.mxu0 0.0
        %847 = vmatpush1.msra.mxu0 0.0
        %848 = vmatprep.subr.mxu0 0.0
        %849 = vmatpush1.msra.mxu0 0.0
        %850 = vmatprep.subr.mxu0 0.0
        %851 = vmatpush1.msra.mxu0 0.0
        %852 = vmatprep.subr.mxu0 0.0
        %853 = vmatpush1.msra.mxu0 0.0
        %854 = vmatprep.subr.mxu0 0.0
        %855 = vmatpush1.msra.mxu0 0.0
        %856 = vmatprep.subr.mxu0 0.0
        %857 = vmatpush1.msra.mxu0 0.0
        %858 = vmatprep.subr.mxu0 0.0
        %859 = vmatpush1.msra.mxu0 0.0
        %860 = vmatprep.subr.mxu0 0.0
        %861 = vmatpush1.msra.mxu0 0.0
        %862 = vmatprep.subr.mxu0 0.0
        %863 = vmatpush1.msra.mxu0 0.0
        %864 = vmatprep.subr.mxu0 0.0
        %865 = vmatpush1.msra.mxu0 0.0
        %866 = vmatprep.subr.mxu0 0.0
        %867 = vmatpush1.msra.mxu0 0.0
        %868 = vmatprep.subr.mxu0 0.0
        %869 = vmatpush1.msra.mxu0 0.0
        %870 = vmatprep.subr.mxu0 0.0
        %871 = vmatpush1.msra.mxu0 0.0
        %872 = vmatprep.subr.mxu0 0.0
        %873 = vmatpush1.msra.mxu0 0.0
        %874 = vmatprep.subr.mxu0 0.0
        %875 = vmatpush1.msra.mxu0 0.0
        %876 = vmatprep.subr.mxu0 %v844
        %877 = vmatpush1.msra.mxu0 %v841
        %878 = vmatprep.subr.mxu0 0.0
        %879 = vmatpush2.msra.mxu0 0.0
        %880 = vmatprep.subr.mxu0 0.0
        %881 = vmatpush2.msra.mxu0 0.0
        %882 = vmatprep.subr.mxu0 0.0
        %883 = vmatpush2.msra.mxu0 0.0
        %884 = vmatprep.subr.mxu0 0.0
        %885 = vmatpush2.msra.mxu0 0.0
        %886 = vmatprep.subr.mxu0 0.0
        %887 = vmatpush2.msra.mxu0 0.0
        %888 = vmatprep.subr.mxu0 0.0
        %889 = vmatpush2.msra.mxu0 0.0
        %890 = vmatprep.subr.mxu0 0.0
        %891 = vmatpush2.msra.mxu0 0.0
        %892 = vmatprep.subr.mxu0 0.0
        %893 = vmatpush2.msra.mxu0 0.0
        %894 = vmatprep.subr.mxu0 0.0
        %895 = vmatpush2.msra.mxu0 0.0
        %896 = vmatprep.subr.mxu0 0.0
        %897 = vmatpush2.msra.mxu0 0.0
        %898 = vmatprep.subr.mxu0 0.0
        %899 = vmatpush2.msra.mxu0 0.0
        %900 = vmatprep.subr.mxu0 0.0
        %901 = vmatpush2.msra.mxu0 0.0
        %902 = vmatprep.subr.mxu0 0.0
        %903 = vmatpush2.msra.mxu0 0.0
        %904 = vmatprep.subr.mxu0 0.0
        %905 = vmatpush2.msra.mxu0 0.0
        %906 = vmatprep.subr.mxu0 0.0
        %907 = vmatpush2.msra.mxu0 0.0
        %908 = vmatprep.subr.mxu0 0.0
        %909 = vmatpush2.msra.mxu0 0.0
        %910 = vmatprep.mubr.f32.mxu0 0.0
        %911 = vmatmul.mubr.f32.gmra.mxu0 %v837
        %v912 = vpop.f32.mrf.mxu0
        %v913 = vadd.f32 %v833, %v912
        %v914 = vpop.f32.mrf.mxu0
        %v915 = vadd.f32 %v833, %v914
        %916 = vdwg.mxu0
        %v917 = vld [vmem:[%s8] sm:$0xf]
        %v918 = vld [vmem:[%s9] sm:$0xf]
        %920 = vset.pattern.permute.xlu0 0
        %921 = vperm.xlu0 %920, %v918
        %v922 = vpop.permute.xlu0 %921
        %v925 = vcombine.high %v659, %v659
        %v927 = vsel %vm835, %v917, 0
        %v929 = vsel %vm839, %v659, 0
        %v931 = vsel %vm839, %v925, 0
        %933 = vmatprep.subr.mxu0 0.0
        %934 = vmatpush1.msra.mxu0 0.0
        %935 = vmatprep.subr.mxu0 0.0
        %936 = vmatpush1.msra.mxu0 0.0
        %937 = vmatprep.subr.mxu0 0.0
        %938 = vmatpush1.msra.mxu0 0.0
        %939 = vmatprep.subr.mxu0 0.0
        %940 = vmatpush1.msra.mxu0 0.0
        %941 = vmatprep.subr.mxu0 0.0
        %942 = vmatpush1.msra.mxu0 0.0
        %943 = vmatprep.subr.mxu0 0.0
        %944 = vmatpush1.msra.mxu0 0.0
        %945 = vmatprep.subr.mxu0 0.0
        %946 = vmatpush1.msra.mxu0 0.0
        %947 = vmatprep.subr.mxu0 0.0
        %948 = vmatpush1.msra.mxu0 0.0
        %949 = vmatprep.subr.mxu0 0.0
        %950 = vmatpush1.msra.mxu0 0.0
        %951 = vmatprep.subr.mxu0 0.0
        %952 = vmatpush1.msra.mxu0 0.0
        %953 = vmatprep.subr.mxu0 0.0
        %954 = vmatpush1.msra.mxu0 0.0
        %955 = vmatprep.subr.mxu0 0.0
        %956 = vmatpush1.msra.mxu0 0.0
        %957 = vmatprep.subr.mxu0 0.0
        %958 = vmatpush1.msra.mxu0 0.0
        %959 = vmatprep.subr.mxu0 0.0
        %960 = vmatpush1.msra.mxu0 0.0
        %961 = vmatprep.subr.mxu0 0.0
        %962 = vmatpush1.msra.mxu0 0.0
        %963 = vmatprep.subr.mxu0 %v931
        %964 = vmatpush1.msra.mxu0 %v929
        %965 = vmatprep.subr.mxu0 0.0
        %966 = vmatpush2.msra.mxu0 0.0
        %967 = vmatprep.subr.mxu0 0.0
        %968 = vmatpush2.msra.mxu0 0.0
        %969 = vmatprep.subr.mxu0 0.0
        %970 = vmatpush2.msra.mxu0 0.0
        %971 = vmatprep.subr.mxu0 0.0
        %972 = vmatpush2.msra.mxu0 0.0
        %973 = vmatprep.subr.mxu0 0.0
        %974 = vmatpush2.msra.mxu0 0.0
        %975 = vmatprep.subr.mxu0 0.0
        %976 = vmatpush2.msra.mxu0 0.0
        %977 = vmatprep.subr.mxu0 0.0
        %978 = vmatpush2.msra.mxu0 0.0
        %979 = vmatprep.subr.mxu0 0.0
        %980 = vmatpush2.msra.mxu0 0.0
        %981 = vmatprep.subr.mxu0 0.0
        %982 = vmatpush2.msra.mxu0 0.0
        %983 = vmatprep.subr.mxu0 0.0
        %984 = vmatpush2.msra.mxu0 0.0
        %985 = vmatprep.subr.mxu0 0.0
        %986 = vmatpush2.msra.mxu0 0.0
        %987 = vmatprep.subr.mxu0 0.0
        %988 = vmatpush2.msra.mxu0 0.0
        %989 = vmatprep.subr.mxu0 0.0
        %990 = vmatpush2.msra.mxu0 0.0
        %991 = vmatprep.subr.mxu0 0.0
        %992 = vmatpush2.msra.mxu0 0.0
        %993 = vmatprep.subr.mxu0 0.0
        %994 = vmatpush2.msra.mxu0 0.0
        %995 = vmatprep.subr.mxu0 0.0
        %996 = vmatpush2.msra.mxu0 0.0
        %997 = vmatprep.mubr.f32.mxu0 0.0
        %998 = vmatmul.mubr.f32.gmra.mxu0 %v927
        %v999 = vpop.f32.mrf.mxu0
        %v1000 = vadd.f32 %v922, %v999
        %v1001 = vpop.f32.mrf.mxu0
        %v1002 = vadd.f32 %v922, %v1001
        %1003 = vdwg.mxu0
        %v1004 = vmax.f32 %v1000, 0.0
        %v1005 = vmax.f32 %v1002, 0.0
        %v1006 = vld [vmem:[%s10] sm:$0xff]
        %v1007 = vld [vmem:[%s11] sm:$0xff]
        %1009 = vset.pattern.permute.xlu0 0
        %1010 = vperm.xlu0 %1009, %v1007
        %v1011 = vpop.permute.xlu0 %1010
        %v1014 = vsel %vm835, %v1006, 0
        %v1017 = vsel %vm839, %v1004, 0
        %v1020 = vsel %vm839, %v1005, 0
        %1022 = vmatprep.subr.mxu0 0.0
        %1023 = vmatpush1.msra.mxu0 0.0
        %1024 = vmatprep.subr.mxu0 0.0
        %1025 = vmatpush1.msra.mxu0 0.0
        %1026 = vmatprep.subr.mxu0 0.0
        %1027 = vmatpush1.msra.mxu0 0.0
        %1028 = vmatprep.subr.mxu0 0.0
        %1029 = vmatpush1.msra.mxu0 0.0
        %1030 = vmatprep.subr.mxu0 0.0
        %1031 = vmatpush1.msra.mxu0 0.0
        %1032 = vmatprep.subr.mxu0 0.0
        %1033 = vmatpush1.msra.mxu0 0.0
        %1034 = vmatprep.subr.mxu0 0.0
        %1035 = vmatpush1.msra.mxu0 0.0
        %1036 = vmatprep.subr.mxu0 0.0
        %1037 = vmatpush1.msra.mxu0 0.0
        %1038 = vmatprep.subr.mxu0 0.0
        %1039 = vmatpush1.msra.mxu0 0.0
        %1040 = vmatprep.subr.mxu0 0.0
        %1041 = vmatpush1.msra.mxu0 0.0
        %1042 = vmatprep.subr.mxu0 0.0
        %1043 = vmatpush1.msra.mxu0 0.0
        %1044 = vmatprep.subr.mxu0 0.0
        %1045 = vmatpush1.msra.mxu0 0.0
        %1046 = vmatprep.subr.mxu0 0.0
        %1047 = vmatpush1.msra.mxu0 0.0
        %1048 = vmatprep.subr.mxu0 0.0
        %1049 = vmatpush1.msra.mxu0 0.0
        %1050 = vmatprep.subr.mxu0 0.0
        %1051 = vmatpush1.msra.mxu0 0.0
        %1052 = vmatprep.subr.mxu0 %v1020
        %1053 = vmatpush1.msra.mxu0 %v1017
        %1054 = vmatprep.subr.mxu0 0.0
        %1055 = vmatpush2.msra.mxu0 0.0
        %1056 = vmatprep.subr.mxu0 0.0
        %1057 = vmatpush2.msra.mxu0 0.0
        %1058 = vmatprep.subr.mxu0 0.0
        %1059 = vmatpush2.msra.mxu0 0.0
        %1060 = vmatprep.subr.mxu0 0.0
        %1061 = vmatpush2.msra.mxu0 0.0
        %1062 = vmatprep.subr.mxu0 0.0
        %1063 = vmatpush2.msra.mxu0 0.0
        %1064 = vmatprep.subr.mxu0 0.0
        %1065 = vmatpush2.msra.mxu0 0.0
        %1066 = vmatprep.subr.mxu0 0.0
        %1067 = vmatpush2.msra.mxu0 0.0
        %1068 = vmatprep.subr.mxu0 0.0
        %1069 = vmatpush2.msra.mxu0 0.0
        %1070 = vmatprep.subr.mxu0 0.0
        %1071 = vmatpush2.msra.mxu0 0.0
        %1072 = vmatprep.subr.mxu0 0.0
        %1073 = vmatpush2.msra.mxu0 0.0
        %1074 = vmatprep.subr.mxu0 0.0
        %1075 = vmatpush2.msra.mxu0 0.0
        %1076 = vmatprep.subr.mxu0 0.0
        %1077 = vmatpush2.msra.mxu0 0.0
        %1078 = vmatprep.subr.mxu0 0.0
        %1079 = vmatpush2.msra.mxu0 0.0
        %1080 = vmatprep.subr.mxu0 0.0
        %1081 = vmatpush2.msra.mxu0 0.0
        %1082 = vmatprep.subr.mxu0 0.0
        %1083 = vmatpush2.msra.mxu0 0.0
        %1084 = vmatprep.subr.mxu0 0.0
        %1085 = vmatpush2.msra.mxu0 0.0
        %1086 = vmatprep.mubr.f32.mxu0 0.0
        %1087 = vmatmul.mubr.f32.gmra.mxu0 %v1014
        %v1088 = vpop.f32.mrf.mxu0
        %v1089 = vadd.f32 %v1011, %v1088
        %v1090 = vpop.f32.mrf.mxu0
        %v1091 = vadd.f32 %v1011, %v1090
        %1092 = vdwg.mxu0
        %v1093 = vmax.f32 %v1089, 0.0
        %v1094 = vmax.f32 %v1091, 0.0
        %v1095 = vld [vmem:[%s12] sm:$0xf]
        %v1096 = vld [vmem:[%s13] sm:$0xf]
        %1098 = vset.pattern.permute.xlu0 0
        %1099 = vperm.xlu0 %1098, %v1096
        %v1100 = vpop.permute.xlu0 %1099
        %v1103 = vsel %vm751, %v1095, 0
        %1105 = vmatprep.subr.mxu0 0.0
        %1106 = vmatpush1.msra.mxu0 0.0
        %1107 = vmatprep.subr.mxu0 0.0
        %1108 = vmatpush1.msra.mxu0 0.0
        %1109 = vmatprep.subr.mxu0 0.0
        %1110 = vmatpush1.msra.mxu0 0.0
        %1111 = vmatprep.subr.mxu0 0.0
        %1112 = vmatpush1.msra.mxu0 0.0
        %1113 = vmatprep.subr.mxu0 0.0
        %1114 = vmatpush1.msra.mxu0 0.0
        %1115 = vmatprep.subr.mxu0 0.0
        %1116 = vmatpush1.msra.mxu0 0.0
        %1117 = vmatprep.subr.mxu0 0.0
        %1118 = vmatpush1.msra.mxu0 0.0
        %1119 = vmatprep.subr.mxu0 0.0
        %1120 = vmatpush1.msra.mxu0 0.0
        %1121 = vmatprep.subr.mxu0 0.0
        %1122 = vmatpush1.msra.mxu0 0.0
        %1123 = vmatprep.subr.mxu0 0.0
        %1124 = vmatpush1.msra.mxu0 0.0
        %1125 = vmatprep.subr.mxu0 0.0
        %1126 = vmatpush1.msra.mxu0 0.0
        %1127 = vmatprep.subr.mxu0 0.0
        %1128 = vmatpush1.msra.mxu0 0.0
        %1129 = vmatprep.subr.mxu0 0.0
        %1130 = vmatpush1.msra.mxu0 0.0
        %1131 = vmatprep.subr.mxu0 0.0
        %1132 = vmatpush1.msra.mxu0 0.0
        %1133 = vmatprep.subr.mxu0 0.0
        %1134 = vmatpush1.msra.mxu0 0.0
        %1135 = vmatprep.subr.mxu0 %v1094
        %1136 = vmatpush1.msra.mxu0 %v1093
        %1137 = vmatprep.subr.mxu0 0.0
        %1138 = vmatpush2.msra.mxu0 0.0
        %1139 = vmatprep.subr.mxu0 0.0
        %1140 = vmatpush2.msra.mxu0 0.0
        %1141 = vmatprep.subr.mxu0 0.0
        %1142 = vmatpush2.msra.mxu0 0.0
        %1143 = vmatprep.subr.mxu0 0.0
        %1144 = vmatpush2.msra.mxu0 0.0
        %1145 = vmatprep.subr.mxu0 0.0
        %1146 = vmatpush2.msra.mxu0 0.0
        %1147 = vmatprep.subr.mxu0 0.0
        %1148 = vmatpush2.msra.mxu0 0.0
        %1149 = vmatprep.subr.mxu0 0.0
        %1150 = vmatpush2.msra.mxu0 0.0
        %1151 = vmatprep.subr.mxu0 0.0
        %1152 = vmatpush2.msra.mxu0 0.0
        %1153 = vmatprep.subr.mxu0 0.0
        %1154 = vmatpush2.msra.mxu0 0.0
        %1155 = vmatprep.subr.mxu0 0.0
        %1156 = vmatpush2.msra.mxu0 0.0
        %1157 = vmatprep.subr.mxu0 0.0
        %1158 = vmatpush2.msra.mxu0 0.0
        %1159 = vmatprep.subr.mxu0 0.0
        %1160 = vmatpush2.msra.mxu0 0.0
        %1161 = vmatprep.subr.mxu0 0.0
        %1162 = vmatpush2.msra.mxu0 0.0
        %1163 = vmatprep.subr.mxu0 0.0
        %1164 = vmatpush2.msra.mxu0 0.0
        %1165 = vmatprep.subr.mxu0 0.0
        %1166 = vmatpush2.msra.mxu0 0.0
        %1167 = vmatprep.subr.mxu0 0.0
        %1168 = vmatpush2.msra.mxu0 0.0
        %1169 = vmatprep.mubr.f32.mxu0 0.0
        %1170 = vmatmul.mubr.f32.gmra.mxu0 %v1103
        %v1171 = vpop.f32.mrf.mxu0
        %v1172 = vadd.f32 %v1100, %v1171
        %v1173 = vpop.f32.mrf.mxu0
        %v1174 = vadd.f32 %v1100, %v1173
        %1175 = vdwg.mxu0
        %v1176 = vmax.f32 %v1172, 0.0
        %v1177 = vmax.f32 %v1174, 0.0
        %v1178 = vld [vmem:[%s14] sm:$0xff]
        %v1179 = vld [vmem:[%s15] sm:$0xff]
        %1181 = vset.pattern.permute.xlu0 0
        %1182 = vperm.xlu0 %1181, %v1179
        %v1183 = vpop.permute.xlu0 %1182
        %v1186 = vsel %vm835, %v1178, 0
        %v1189 = vsel %vm839, %v1176, 0
        %v1192 = vsel %vm839, %v1177, 0
        %1194 = vmatprep.subr.mxu0 0.0
        %1195 = vmatpush1.msra.mxu0 0.0
        %1196 = vmatprep.subr.mxu0 0.0
        %1197 = vmatpush1.msra.mxu0 0.0
        %1198 = vmatprep.subr.mxu0 0.0
        %1199 = vmatpush1.msra.mxu0 0.0
        %1200 = vmatprep.subr.mxu0 0.0
        %1201 = vmatpush1.msra.mxu0 0.0
        %1202 = vmatprep.subr.mxu0 0.0
        %1203 = vmatpush1.msra.mxu0 0.0
        %1204 = vmatprep.subr.mxu0 0.0
        %1205 = vmatpush1.msra.mxu0 0.0
        %1206 = vmatprep.subr.mxu0 0.0
        %1207 = vmatpush1.msra.mxu0 0.0
        %1208 = vmatprep.subr.mxu0 0.0
        %1209 = vmatpush1.msra.mxu0 0.0
        %1210 = vmatprep.subr.mxu0 0.0
        %1211 = vmatpush1.msra.mxu0 0.0
        %1212 = vmatprep.subr.mxu0 0.0
        %1213 = vmatpush1.msra.mxu0 0.0
        %1214 = vmatprep.subr.mxu0 0.0
        %1215 = vmatpush1.msra.mxu0 0.0
        %1216 = vmatprep.subr.mxu0 0.0
        %1217 = vmatpush1.msra.mxu0 0.0
        %1218 = vmatprep.subr.mxu0 0.0
        %1219 = vmatpush1.msra.mxu0 0.0
        %1220 = vmatprep.subr.mxu0 0.0
        %1221 = vmatpush1.msra.mxu0 0.0
        %1222 = vmatprep.subr.mxu0 0.0
        %1223 = vmatpush1.msra.mxu0 0.0
        %1224 = vmatprep.subr.mxu0 %v1192
        %1225 = vmatpush1.msra.mxu0 %v1189
        %1226 = vmatprep.subr.mxu0 0.0
        %1227 = vmatpush2.msra.mxu0 0.0
        %1228 = vmatprep.subr.mxu0 0.0
        %1229 = vmatpush2.msra.mxu0 0.0
        %1230 = vmatprep.subr.mxu0 0.0
        %1231 = vmatpush2.msra.mxu0 0.0
        %1232 = vmatprep.subr.mxu0 0.0
        %1233 = vmatpush2.msra.mxu0 0.0
        %1234 = vmatprep.subr.mxu0 0.0
        %1235 = vmatpush2.msra.mxu0 0.0
        %1236 = vmatprep.subr.mxu0 0.0
        %1237 = vmatpush2.msra.mxu0 0.0
        %1238 = vmatprep.subr.mxu0 0.0
        %1239 = vmatpush2.msra.mxu0 0.0
        %1240 = vmatprep.subr.mxu0 0.0
        %1241 = vmatpush2.msra.mxu0 0.0
        %1242 = vmatprep.subr.mxu0 0.0
        %1243 = vmatpush2.msra.mxu0 0.0
        %1244 = vmatprep.subr.mxu0 0.0
        %1245 = vmatpush2.msra.mxu0 0.0
        %1246 = vmatprep.subr.mxu0 0.0
        %1247 = vmatpush2.msra.mxu0 0.0
        %1248 = vmatprep.subr.mxu0 0.0
        %1249 = vmatpush2.msra.mxu0 0.0
        %1250 = vmatprep.subr.mxu0 0.0
        %1251 = vmatpush2.msra.mxu0 0.0
        %1252 = vmatprep.subr.mxu0 0.0
        %1253 = vmatpush2.msra.mxu0 0.0
        %1254 = vmatprep.subr.mxu0 0.0
        %1255 = vmatpush2.msra.mxu0 0.0
        %1256 = vmatprep.subr.mxu0 0.0
        %1257 = vmatpush2.msra.mxu0 0.0
        %1258 = vmatprep.mubr.f32.mxu0 0.0
        %1259 = vmatmul.mubr.f32.gmra.mxu0 %v1186
        %v1260 = vpop.f32.mrf.mxu0
        %v1261 = vadd.f32 %v1183, %v1260
        %v1262 = vpop.f32.mrf.mxu0
        %v1263 = vadd.f32 %v1183, %v1262
        %1264 = vdwg.mxu0
        %v1265 = vxor.u32 %v1261, 2147483648
        %v1266 = vxor.u32 %v1263, 2147483648
        %v1267 = vmul.f32 %v1265, 1.442695
        %v1268 = vpow.pop %v1267
        %v1269 = vmul.f32 %v1266, 1.442695
        %v1270 = vpow.pop %v1269
        %v1271 = vadd.f32 %v1268, 1.0
        %v1272 = vadd.f32 %v1270, 1.0
        %v1273 = vrcp.pop %v1271
        %v1274 = vmul.f32 1.0, %v1273
        %v1275 = vrcp.pop %v1272
        %v1276 = vmul.f32 1.0, %v1275
        %v1277 = vmul.f32 %v913, %v1274
        %v1278 = vmul.f32 %v915, %v1276
        %v1279 = vrot.slane %v1277, 4
        %v1280 = vmax.f32 %v1277, %v1279
        %v1281 = vrot.slane %v1280, 2
        %v1282 = vmax.f32 %v1280, %v1281
        %v1283 = vrot.slane %v1282, 1
        %v1284 = vmax.f32 %v1282, %v1283
        %v1285 = vrot.slane %v1278, 4
        %v1286 = vmax.f32 %v1278, %v1285
        %v1287 = vrot.slane %v1286, 2
        %v1288 = vmax.f32 %v1286, %v1287
        %v1289 = vrot.slane %v1288, 1
        %v1290 = vmax.f32 %v1288, %v1289
        %v1291 = vsub.f32 %v1277, %v1284
        %v1292 = vsub.f32 %v1278, %v1290
        %v1293 = vmul.f32 %v1291, 1.442695
        %v1294 = vpow.pop %v1293
        %v1295 = vmul.f32 %v1292, 1.442695
        %v1296 = vpow.pop %v1295
        %v1297 = vrot.slane %v1294, 4
        %v1298 = vadd.f32 %v1294, %v1297
        %v1299 = vrot.slane %v1298, 2
        %v1300 = vadd.f32 %v1298, %v1299
        %v1301 = vrot.slane %v1300, 1
        %v1302 = vadd.f32 %v1300, %v1301
        %v1303 = vrot.slane %v1296, 4
        %v1304 = vadd.f32 %v1296, %v1303
        %v1305 = vrot.slane %v1304, 2
        %v1306 = vadd.f32 %v1304, %v1305
        %v1307 = vrot.slane %v1306, 1
        %v1308 = vadd.f32 %v1306, %v1307
        %v1309 = vrcp.pop %v1302
        %v1310 = vrcp.pop %v1308
        %v1311 = vmul.f32 %v1294, %v1309
        %v1312 = vmul.f32 %v1296, %v1310
        %v1313 = vld [vmem:[%s16] sm:$0xff]
        %v1314 = vld [vmem:[%s16 + $0x8] sm:$0xff]
        %v1316 = vsel %vm751, %v1313, 0
        %v1319 = vsel %vm751, %v1314, 0
        %1321 = vmatprep.subr.mxu0 0.0
        %1322 = vmatpush1.msra.mxu0 0.0
        %1323 = vmatprep.subr.mxu0 0.0
        %1324 = vmatpush1.msra.mxu0 0.0
        %1325 = vmatprep.subr.mxu0 0.0
        %1326 = vmatpush1.msra.mxu0 0.0
        %1327 = vmatprep.subr.mxu0 0.0
        %1328 = vmatpush1.msra.mxu0 0.0
        %1329 = vmatprep.subr.mxu0 0.0
        %1330 = vmatpush1.msra.mxu0 0.0
        %1331 = vmatprep.subr.mxu0 0.0
        %1332 = vmatpush1.msra.mxu0 0.0
        %1333 = vmatprep.subr.mxu0 0.0
        %1334 = vmatpush1.msra.mxu0 0.0
        %1335 = vmatprep.subr.mxu0 0.0
        %1336 = vmatpush1.msra.mxu0 0.0
        %1337 = vmatprep.subr.mxu0 0.0
        %1338 = vmatpush1.msra.mxu0 0.0
        %1339 = vmatprep.subr.mxu0 0.0
        %1340 = vmatpush1.msra.mxu0 0.0
        %1341 = vmatprep.subr.mxu0 0.0
        %1342 = vmatpush1.msra.mxu0 0.0
        %1343 = vmatprep.subr.mxu0 0.0
        %1344 = vmatpush1.msra.mxu0 0.0
        %1345 = vmatprep.subr.mxu0 0.0
        %1346 = vmatpush1.msra.mxu0 0.0
        %1347 = vmatprep.subr.mxu0 0.0
        %1348 = vmatpush1.msra.mxu0 0.0
        %1349 = vmatprep.subr.mxu0 0.0
        %1350 = vmatpush1.msra.mxu0 0.0
        %1351 = vmatprep.subr.mxu0 %v1312
        %1352 = vmatpush1.msra.mxu0 %v1311
        %1353 = vmatprep.subr.mxu0 0.0
        %1354 = vmatpush2.msra.mxu0 0.0
        %1355 = vmatprep.subr.mxu0 0.0
        %1356 = vmatpush2.msra.mxu0 0.0
        %1357 = vmatprep.subr.mxu0 0.0
        %1358 = vmatpush2.msra.mxu0 0.0
        %1359 = vmatprep.subr.mxu0 0.0
        %1360 = vmatpush2.msra.mxu0 0.0
        %1361 = vmatprep.subr.mxu0 0.0
        %1362 = vmatpush2.msra.mxu0 0.0
        %1363 = vmatprep.subr.mxu0 0.0
        %1364 = vmatpush2.msra.mxu0 0.0
        %1365 = vmatprep.subr.mxu0 0.0
        %1366 = vmatpush2.msra.mxu0 0.0
        %1367 = vmatprep.subr.mxu0 0.0
        %1368 = vmatpush2.msra.mxu0 0.0
        %1369 = vmatprep.subr.mxu0 0.0
        %1370 = vmatpush2.msra.mxu0 0.0
        %1371 = vmatprep.subr.mxu0 0.0
        %1372 = vmatpush2.msra.mxu0 0.0
        %1373 = vmatprep.subr.mxu0 0.0
        %1374 = vmatpush2.msra.mxu0 0.0
        %1375 = vmatprep.subr.mxu0 0.0
        %1376 = vmatpush2.msra.mxu0 0.0
        %1377 = vmatprep.subr.mxu0 0.0
        %1378 = vmatpush2.msra.mxu0 0.0
        %1379 = vmatprep.subr.mxu0 0.0
        %1380 = vmatpush2.msra.mxu0 0.0
        %1381 = vmatprep.subr.mxu0 0.0
        %1382 = vmatpush2.msra.mxu0 0.0
        %1383 = vmatprep.subr.mxu0 0.0
        %1384 = vmatpush2.msra.mxu0 0.0
        %1385 = vmatprep.mubr.f32.mxu0 0.0
        %1386 = vmatmul.mubr.f32.gmra.mxu0 %v1316
        %v1387 = vpop.f32.mrf.mxu0
        %v1388 = vadd.f32 0.0, %v1387
        %v1389 = vpop.f32.mrf.mxu0
        %v1390 = vadd.f32 0.0, %v1389
        %1391 = vmatprep.mubr.f32.mxu0 0.0
        %1392 = vmatmul.mubr.f32.gmra.mxu0 %v1319
        %v1393 = vpop.f32.mrf.mxu0
        %v1394 = vadd.f32 0.0, %v1393
        %v1395 = vpop.f32.mrf.mxu0
        %v1396 = vadd.f32 0.0, %v1395
        %1397 = vdwg.mxu0
        %v1398 = vmax.f32 %v1388, 0.0
        %v1399 = vmax.f32 %v1390, 0.0
        %v1400 = vmax.f32 %v1394, 0.0
        %v1401 = vmax.f32 %v1396, 0.0
        %1402 = vst [vmem:[%s625] sm:$0xff] %v1311
        %1403 = vst [vmem:[%s625 + $0x8] sm:$0xff] %v1312
        %1404 = vst [vmem:[%s632] sm:$0xff] %v1398
        %1405 = vst [vmem:[%s632 + $0x8] sm:$0xff] %v1399
        %1406 = vst [vmem:[%s632 + $0x10] sm:$0xff] %v1400
        %1407 = vst [vmem:[%s632 + $0x18] sm:$0xff] %v1401
        %s1408 = sand.u32 %s429, 1
        %s1409 = scalar_lea.sflag [#allocation3], %s1408
        %s1410 = sand.u32 %s429, 1
        %s1411 = smul.addr %s1410, 16
        %s1412 = scalar_lea.vmem [#allocation2], %s1411
        %s1413 = sand.u32 %s457, 1
        %s1414 = scalar_lea.sflag [#allocation5], %s1413
        %s1415 = sand.u32 %s457, 1
        %s1416 = smul.addr %s1415, 32
        %s1417 = scalar_lea.vmem [#allocation4], %s1416
        // Predicated region
        $region89: #{tpu_custom_call.1} parent=87 // pred_check
          %p1418 = pneg %p439
        $region90: #{tpu_custom_call.1} parent=87 // pred_check_branch
          %1420 = sbr.rel (%p1418) target = $region92
        $region91: #{tpu_custom_call.1} parent=87 // pred_region
          %s1421 = smul.u32 2, %s41
          %s1423 = ssub.s32 256, 256
          %1424 = vsyncadd %s1409, %s1423
          %s1425 = smul.addr %s40, 2
          %s1426 = sadd.s32 %s1421, %s1425
          %s1427 = smul.addr %s1426, 128
          %s1428 = scalar_lea.hbm %s17, %s1427
          %s1430 = sshll.u32 %s1412, 4
          %s1431 = int_to_ptr.vmem [resolvable:$true] %s1430
          %1433 = dma.vmem_to_hbm [thread:$0]  %s1431, 256, %s1428, %s1409
        $region92: #{tpu_custom_call.1} parent=87 // pred_fallthru
          _
        // Predicated region
        $region93: #{tpu_custom_call.1} parent=87 // pred_check
          %p1434 = pneg %p467
        $region94: #{tpu_custom_call.1} parent=87 // pred_check_branch
          %1436 = sbr.rel (%p1434) target = $region96
        $region95: #{tpu_custom_call.1} parent=87 // pred_region
          %s1437 = smul.u32 2, %s41
          %s1439 = ssub.s32 512, 512
          %1440 = vsyncadd %s1414, %s1439
          %s1441 = smul.addr %s40, 4
          %s1442 = sadd.s32 %s1437, %s1441
          %s1443 = smul.addr %s1442, 128
          %s1444 = scalar_lea.hbm %s18, %s1443
          %s1445 = sshll.u32 %s1417, 4
          %s1446 = int_to_ptr.vmem [resolvable:$true] %s1445
          %1451 = dma.vmem_to_hbm [thread:$0]  %s1446, 512, %s1444, %s1414, 256, 256, 16
        $region96: #{tpu_custom_call.1} parent=87 // pred_fallthru
          _
      $region88: #{tpu_custom_call.1} parent=5 // pred_fallthru
        _
      %p1452 = scmp.le.s32.totalorder 2, %s31
      // Predicated region
      $region97: #{tpu_custom_call.1} parent=5 // pred_check
        %p1453 = pneg %p1452
      $region98: #{tpu_custom_call.1} parent=5 // pred_check_branch
        %1455 = sbr.rel (%p1453) target = $region100
      $region99: #{tpu_custom_call.1} parent=5 // pred_region
        %s1456 = ssub.s32 %s31, 2
        // Predicated region
        $region101: #{tpu_custom_call.1} parent=99 // pred_check
          %p1457 = pneg %p445
        $region102: #{tpu_custom_call.1} parent=99 // pred_check_branch
          %1459 = sbr.rel (%p1457) target = $region104
        $region103: #{tpu_custom_call.1} parent=99 // pred_region
          %s1460 = sand.u32 %s430, 1
          %s1461 = scalar_lea.sflag [#allocation3], %s1460
          %s1462 = sand.u32 %s430, 1
          %s1463 = smul.addr %s1462, 16
          %s1464 = scalar_lea.vmem [#allocation2], %s1463
          %1465 = dma.done %s1461, 256
        $region104: #{tpu_custom_call.1} parent=99 // pred_fallthru
          _
        // Predicated region
        $region105: #{tpu_custom_call.1} parent=99 // pred_check
          %p1466 = pneg %p473
        $region106: #{tpu_custom_call.1} parent=99 // pred_check_branch
          %1468 = sbr.rel (%p1466) target = $region108
        $region107: #{tpu_custom_call.1} parent=99 // pred_region
          %s1469 = sand.u32 %s458, 1
          %s1470 = scalar_lea.sflag [#allocation5], %s1469
          %s1471 = sand.u32 %s458, 1
          %s1472 = smul.addr %s1471, 32
          %s1473 = scalar_lea.vmem [#allocation4], %s1472
          %1474 = dma.done %s1470, 512
        $region108: #{tpu_custom_call.1} parent=99 // pred_fallthru
          _
      $region100: #{tpu_custom_call.1} parent=5 // pred_fallthru
        _
    $region6: #{tpu_custom_call.1} parent=1 // loop_footer
      %s35 = sadd.s32 1, %s31
    $region7: #{tpu_custom_call.1} parent=1 // loop_footer_branch
      %30 = sbr.rel target = $region3
    $region8: #{tpu_custom_call.1} parent=1 // loop_exit
      _
    %1475 = vsyncpa [#allocation3], 1
    %s1476 = scalar_lea.sflag [#allocation3], 1
    %1477 = vsyncpa %s1476, 1
    %1478 = vsyncpa [#allocation5], 1
    %s1479 = scalar_lea.sflag [#allocation5], 1
    %1480 = vsyncpa %s1479, 1

</llo_original>
